<compile_context>
chip_gen: v5e
topology: v5e:2x2
jax: 0.10.0
libtpu: 0.0.40
codegen_flags: <defaults>
</compile_context>

<pallas_src>
import functools

import jax
import jax.numpy as jnp
from jax.experimental import pallas as pl
from jax.experimental.pallas import tpu as pltpu


# ----------------------------------------------------------------------------
# Fused bilinear-resize + softmax cross-entropy Pallas kernel
# ----------------------------------------------------------------------------
def _fused_resize_ce_kernel(a_ref, bt_ref, x_ref, tgt_ref, ce_ref, prob_ref, th_ref):
    # a_ref   : (rh, H_in)        H-interp matrix rows for this output row block
    # bt_ref  : (W_in, W_out)     W-interp matrix (transposed), resident
    # x_ref   : (C, H_in, W_in)   all class planes of one batch element, resident
    # tgt_ref : (rh, W_out) i32   target class per output pixel (ignored -> 0)
    # ce_ref  : (rh, W_out) f32   -log softmax[target]
    # prob_ref: (rh, W_out) f32   softmax prob of the target class
    # th_ref  : (C*rh, W_in) f32  VMEM scratch holding the H-interpolated planes
    c, h_in, w_in = x_ref.shape
    rh = a_ref.shape[0]
    w_out = bt_ref.shape[1]

    a = a_ref[...]
    # H-interp: one small MXU matmul per class, written straight into scratch
    # via leading-axis ref slices (no value-level reshape/slice relayouts).
    for ci in range(c):
        th_ref[pl.ds(ci * rh, rh), :] = jnp.dot(
            a, x_ref[ci], preferred_element_type=jnp.float32)

    # W-interp: one big MXU matmul covering all classes of this row block.
    logits = jnp.dot(th_ref[...], bt_ref[...],
                     preferred_element_type=jnp.float32)            # (C*rh, W_out)
    logits = logits.reshape(c, rh, w_out)                           # class axis leading

    # Softmax cross-entropy.  Reductions over the leading class axis are plain
    # cross-vreg VPU accumulations (no XLU shuffles needed).
    m = jnp.max(logits, axis=0)                                     # (rh, W_out)
    s = jnp.sum(jnp.exp(logits - m[None]), axis=0)                  # (rh, W_out)
    tgt = tgt_ref[...]
    cls = jax.lax.broadcasted_iota(jnp.int32, logits.shape, 0)      # (C, rh, W_out)
    tgt_logit = jnp.sum(jnp.where(cls == tgt[None], logits, 0.0), axis=0)
    ce = (m + jnp.log(s)) - tgt_logit                               # -log softmax[target]
    ce_ref[...] = ce
    prob_ref[...] = jnp.exp(-ce)                                    # softmax[target]


# ----------------------------------------------------------------------------
# Wrapper around pallas_call
# ----------------------------------------------------------------------------
def _interp_matrix(out_size, in_size):
    """1-D bilinear interpolation matrix, F.interpolate(..., align_corners=True)."""
    if out_size == 1:
        src = jnp.zeros((out_size,), jnp.float32)
    else:
        scale = (in_size - 1) / (out_size - 1)
        src = jnp.arange(out_size, dtype=jnp.float32) * jnp.float32(scale)
    i0 = jnp.clip(jnp.floor(src).astype(jnp.int32), 0, in_size - 1)
    i1 = jnp.clip(i0 + 1, 0, in_size - 1)
    frac = src - i0.astype(jnp.float32)
    oh0 = jax.nn.one_hot(i0, in_size, dtype=jnp.float32)
    oh1 = jax.nn.one_hot(i1, in_size, dtype=jnp.float32)
    return (1.0 - frac)[:, None] * oh0 + frac[:, None] * oh1        # (out, in)


def _vmem_capacity_bytes():
    try:
        return int(pltpu.get_tpu_info().vmem_capacity_bytes)        # 64 MiB v7x, 128 MiB v5e/v6e
    except Exception:
        return 64 << 20                                              # v7x-safe default


def _round_up(x, m):
    return ((x + m - 1) // m) * m


def _estimate_step_bytes(c, h_in, w_in, w_out, rh):
    """Rough per-grid-step VMEM footprint: double-buffered blocks + scratch +
    compiler value temporaries for the (C, rh, W_out) logits/exp planes."""
    w_in_p, w_out_p, h_in_p = _round_up(w_in, 128), _round_up(w_out, 128), _round_up(h_in, 128)
    rh_p, h_in_s, w_in_s = _round_up(rh, 8), _round_up(h_in, 8), _round_up(w_in, 8)
    blocks = (c * h_in_s * w_in_p          # x (resident, but budget conservatively)
              + rh_p * h_in_p              # a
              + w_in_s * w_out_p           # bt
              + 3 * rh_p * w_out_p)        # tgt + ce + prob
    scratch = c * rh_p * w_in_p
    values = 4 * c * rh_p * w_out_p        # logits / exp / slack for the compiler
    return 4 * (2 * blocks + scratch + values)


def _choose_row_block(c, h_in, w_in, h_out, w_out, vmem_cap):
    """Largest output-row block (multiple of 8, or the full height) fitting ~55% of VMEM."""
    budget = int(vmem_cap * 0.55)
    fits = lambda r: _estimate_step_bytes(c, h_in, w_in, w_out, r) <= budget
    if h_out <= 256 and fits(h_out):
        return h_out                       # whole height in one block (full-dim block)
    for rh in (256, 128, 64, 32, 16, 8):
        if rh < h_out and fits(rh):
            return rh
    return min(8, h_out)


def fused_resize_cross_entropy(x, tgt, h_out, w_out):
    """Bilinear-upsample x (align_corners=True) to (h_out, w_out) and compute the
    per-pixel softmax cross entropy against tgt, without materializing the
    upsampled logits in HBM.

    x  : (Bx, C, H_in, W_in) logits at low resolution
    tgt: (Bx, h_out, w_out)  int32 target classes (ignored pixels clamped to [0, C))
    returns (ce, prob), each (Bx, h_out, w_out) f32:
      ce   = -log softmax[target] of the upsampled logits
      prob = softmax prob of the target class.
    """
    bx, c, h_in, w_in = x.shape
    a = _interp_matrix(h_out, h_in)                  # (h_out, h_in)
    bt = _interp_matrix(w_out, w_in).T               # (w_in, w_out)

    cap = _vmem_capacity_bytes()
    rh = _choose_row_block(c, h_in, w_in, h_out, w_out, cap)
    est = _estimate_step_bytes(c, h_in, w_in, w_out, rh)
    vmem_limit = int(min(cap - (8 << 20), max(est + (8 << 20), 32 << 20)))

    grid = (bx, pl.cdiv(h_out, rh))                  # ragged last row block is masked by Pallas
    ce, prob = pl.pallas_call(
        _fused_resize_ce_kernel,
        out_shape=(jax.ShapeDtypeStruct((bx, h_out, w_out), jnp.float32),
                   jax.ShapeDtypeStruct((bx, h_out, w_out), jnp.float32)),
        grid=grid,
        in_specs=[
            pl.BlockSpec((rh, h_in), lambda b, r: (r, 0)),
            pl.BlockSpec((w_in, w_out), lambda b, r: (0, 0)),
            # Full (C, H_in, W_in) slab per batch element; index_map ignores r,
            # so it stays resident across the whole row loop (no re-DMA).
            pl.BlockSpec((pl.Squeezed(), c, h_in, w_in), lambda b, r: (b, 0, 0, 0)),
            pl.BlockSpec((pl.Squeezed(), rh, w_out), lambda b, r: (b, r, 0)),
        ],
        out_specs=(
            pl.BlockSpec((pl.Squeezed(), rh, w_out), lambda b, r: (b, r, 0)),
            pl.BlockSpec((pl.Squeezed(), rh, w_out), lambda b, r: (b, r, 0)),
        ),
        scratch_shapes=[pltpu.VMEM((c * rh, w_in), jnp.float32)],
        compiler_params=pltpu.CompilerParams(
            dimension_semantics=("parallel", "parallel"),
            vmem_limit_bytes=vmem_limit),
    )(a, bt, x.astype(jnp.float32), tgt.astype(jnp.int32))
    return ce, prob


# ----------------------------------------------------------------------------
# Loss glue (reproduces the PyTorch semantics)
# ----------------------------------------------------------------------------
def _ohem_threshold(mask_prob, k, thresh):
    """max(thresh, k-th smallest of mask_prob), exactly, without a sort.

    Probabilities are non-negative f32, so their bit patterns order like int32;
    a 32-step bisection over the bit patterns recovers the exact k-th smallest
    value.  The bisection is skipped when count(prob <= thresh) already >= k."""
    thresh = jnp.asarray(thresh, jnp.float32)
    bits = jax.lax.bitcast_convert_type(mask_prob, jnp.int32)
    thresh_bits = jax.lax.bitcast_convert_type(thresh, jnp.int32)
    count_at_thresh = jnp.sum(bits <= thresh_bits)

    def kth_smallest_above_thresh():
        # invariant: count(bits <= lo) < k <= count(bits <= hi)
        def body(_, state):
            lo, hi = state
            mid = lo + (hi - lo) // 2
            hit = jnp.sum(bits <= mid) >= k
            return jnp.where(hit, lo, mid), jnp.where(hit, mid, hi)
        lo, hi = jax.lax.fori_loop(0, 32, body, (thresh_bits, jnp.max(bits)))
        return jax.lax.bitcast_convert_type(hi, jnp.float32)

    return jax.lax.cond(count_at_thresh >= k, lambda: thresh, kth_smallest_above_thresh)


def _ohem_cross_entropy(ce, prob, target, ignore_label, thresh, min_kept):
    """OhemCrossEntropy2dTensor.forward (reduction='mean', use_weight=False),
    given the per-pixel CE and target-class prob of the upsampled logits."""
    ce = ce.reshape(-1)
    prob = prob.reshape(-1)
    target = target.reshape(-1)
    n = target.shape[0]
    valid = target != ignore_label
    num_valid = jnp.sum(valid)

    # Reference thresholds over ALL N pixels with invalid prob filled to 1.0.
    mask_prob = jnp.where(valid, prob, jnp.float32(1.0))
    if min_kept > 0:
        threshold = _ohem_threshold(mask_prob, min(n, int(min_kept)), thresh)
    else:
        threshold = jnp.asarray(thresh, jnp.float32)
    kept = mask_prob <= threshold

    # OHEM only applies when num_valid > 0 and min_kept <= num_valid.
    # TODO(synk): the reference prints 'Labels: ...' when min_kept > num_valid; side effect skipped.
    do_ohem = jnp.logical_and(num_valid > 0, min_kept <= num_valid)
    final_valid = jnp.where(do_ohem, jnp.logical_and(valid, kept), valid)

    denom = jnp.sum(final_valid).astype(jnp.float32)
    return jnp.sum(jnp.where(final_valid, ce, 0.0)) / denom


def _standard_cross_entropy(ce, target, ignore_label):
    """torch.nn.CrossEntropyLoss(ignore_index=..., reduction='mean')."""
    ce = ce.reshape(-1)
    target = target.reshape(-1)
    valid = target != ignore_label
    denom = jnp.sum(valid).astype(jnp.float32)
    return jnp.sum(jnp.where(valid, ce, 0.0)) / denom


@functools.partial(jax.jit, static_argnames=("ignore_index", "thresh", "min_kept"))
def criterion_ohem_dsn(pred0, pred1, target, *, ignore_index=255, thresh=0.7,
                       min_kept=100000):
    """CriterionOhemDSN.forward(preds=(pred0, pred1), target)."""
    b, h, w = target.shape
    valid = target != ignore_index
    tgt_clamped = jnp.where(valid, target, 0).astype(jnp.int32)      # (B, H, W)

    if pred0.shape == pred1.shape:
        # Batch both DSN branches through one fused pallas_call (one launch,
        # longer grid for the megacore to split).
        x_all = jnp.concatenate([pred0, pred1], axis=0)
        tgt_all = jnp.concatenate([tgt_clamped, tgt_clamped], axis=0)
        ce_all, prob_all = fused_resize_cross_entropy(x_all, tgt_all, h, w)
        ce0, prob0, ce1 = ce_all[:b], prob_all[:b], ce_all[b:]
    else:
        ce0, prob0 = fused_resize_cross_entropy(pred0, tgt_clamped, h, w)
        ce1, _ = fused_resize_cross_entropy(pred1, tgt_clamped, h, w)

    loss1 = _ohem_cross_entropy(ce0, prob0, target, ignore_index, thresh, min_kept)
    loss2 = _standard_cross_entropy(ce1, target, ignore_index)
    return loss1 + loss2 * 0.4


# ----------------------------------------------------------------------------
if __name__ == "__main__":
    key = jax.random.PRNGKey(0)
    b, c = 2, 19          # batch, classes
    hp, wp = 16, 16       # prediction (pre-upsample) spatial size
    h, w = 32, 32         # label spatial size
    ignore = 255

    k1, k2, k3, k4 = jax.random.split(key, 4)
    pred0 = jax.random.normal(k1, (b, c, hp, wp), jnp.float32)
    pred1 = jax.random.normal(k2, (b, c, hp, wp), jnp.float32)
    target = jax.random.randint(k3, (b, h, w), 0, c).astype(jnp.int32)
    ignore_mask = jax.random.uniform(k4, (b, h, w)) < 0.1
    target = jnp.where(ignore_mask, ignore, target).astype(jnp.int32)

    loss = criterion_ohem_dsn(pred0, pred1, target,
                              ignore_index=ignore, thresh=0.7, min_kept=100000)
    jax.block_until_ready(loss)
    assert loss.shape == () and bool(jnp.isfinite(loss))
    print("KERNEL_OK")
</pallas_src>

<mosaic_0001>
module attributes {stable_mosaic.version = 11 : i64} {
  func.func @_fused_resize_ce_kernel(%arg0: i32, %arg1: i32, %arg2: memref<32x16xf32, #tpu.memory_space<vmem>>, %arg3: memref<16x32xf32, #tpu.memory_space<vmem>>, %arg4: memref<1x19x16x16xf32, #tpu.memory_space<vmem>>, %arg5: memref<1x32x32xi32, #tpu.memory_space<vmem>>, %arg6: memref<1x32x32xf32, #tpu.memory_space<vmem>>, %arg7: memref<1x32x32xf32, #tpu.memory_space<vmem>>, %arg8: memref<608x16xf32, #tpu.memory_space<vmem>>) attributes {dimension_semantics = [#tpu.dimension_semantics<parallel>, #tpu.dimension_semantics<parallel>], iteration_bounds = array<i64: 4, 1>, scalar_prefetch = 0 : i64, scratch_operands = 1 : i64, tpu.core_type = #tpu.core_type<tc>, window_params = [{transform_indices = @transform_0, window_bounds = array<i64: 32, 16>}, {pipeline_mode = #tpu.pipeline_mode<synchronous>, transform_indices = @transform_1, window_bounds = array<i64: 16, 32>}, {transform_indices = @transform_2, window_bounds = array<i64: 1, 19, 16, 16>}, {transform_indices = @transform_3, window_bounds = array<i64: 1, 32, 32>}, {transform_indices = @transform_4, window_bounds = array<i64: 1, 32, 32>}, {transform_indices = @transform_5, window_bounds = array<i64: 1, 32, 32>}]} {
    %c0 = arith.constant 0 : index
    %c0_0 = arith.constant 0 : index
    %0 = vector.load %arg2[%c0, %c0_0] : memref<32x16xf32, #tpu.memory_space<vmem>>, vector<32x16xf32>
    %c0_1 = arith.constant 0 : index
    %c0_2 = arith.constant 0 : index
    %c0_3 = arith.constant 0 : index
    %c0_4 = arith.constant 0 : index
    %1 = vector.load %arg4[%c0_1, %c0_2, %c0_3, %c0_4] : memref<1x19x16x16xf32, #tpu.memory_space<vmem>>, vector<1x1x16x16xf32>
    %2 = vector.shape_cast %1 : vector<1x1x16x16xf32> to vector<16x16xf32>
    %cst = arith.constant dense<0.000000e+00> : vector<32x16xf32>
    %3 = tpu.matmul %0, %2, %cst {dimension_numbers = #tpu.dot_dimension_numbers<[1], [0], [0], [1], [0, 0, 1, 1], [], []>} : vector<32x16xf32>, vector<16x16xf32>, vector<32x16xf32> -> vector<32x16xf32>
    %c0_5 = arith.constant 0 : index
    %c0_6 = arith.constant 0 : index
    %4 = vector.load %arg8[%c0_5, %c0_6] : memref<608x16xf32, #tpu.memory_space<vmem>>, vector<32x16xf32>
    tpu.vector_store %arg8[%c0_5, %c0_6], %3 {strides = array<i32>} : memref<608x16xf32, #tpu.memory_space<vmem>>, vector<32x16xf32>,
    %c0_7 = arith.constant 0 : index
    %c1 = arith.constant 1 : index
    %c0_8 = arith.constant 0 : index
    %c0_9 = arith.constant 0 : index
    %5 = vector.load %arg4[%c0_7, %c1, %c0_8, %c0_9] : memref<1x19x16x16xf32, #tpu.memory_space<vmem>>, vector<1x1x16x16xf32>
    %6 = vector.shape_cast %5 : vector<1x1x16x16xf32> to vector<16x16xf32>
    %cst_10 = arith.constant dense<0.000000e+00> : vector<32x16xf32>
    %7 = tpu.matmul %0, %6, %cst_10 {dimension_numbers = #tpu.dot_dimension_numbers<[1], [0], [0], [1], [0, 0, 1, 1], [], []>} : vector<32x16xf32>, vector<16x16xf32>, vector<32x16xf32> -> vector<32x16xf32>
    %c32 = arith.constant 32 : index
    %c0_11 = arith.constant 0 : index
    %8 = vector.load %arg8[%c32, %c0_11] : memref<608x16xf32, #tpu.memory_space<vmem>>, vector<32x16xf32>
    tpu.vector_store %arg8[%c32, %c0_11], %7 {strides = array<i32>} : memref<608x16xf32, #tpu.memory_space<vmem>>, vector<32x16xf32>,
    %c0_12 = arith.constant 0 : index
    %c2 = arith.constant 2 : index
    %c0_13 = arith.constant 0 : index
    %c0_14 = arith.constant 0 : index
    %9 = vector.load %arg4[%c0_12, %c2, %c0_13, %c0_14] : memref<1x19x16x16xf32, #tpu.memory_space<vmem>>, vector<1x1x16x16xf32>
    %10 = vector.shape_cast %9 : vector<1x1x16x16xf32> to vector<16x16xf32>
    %cst_15 = arith.constant dense<0.000000e+00> : vector<32x16xf32>
    %11 = tpu.matmul %0, %10, %cst_15 {dimension_numbers = #tpu.dot_dimension_numbers<[1], [0], [0], [1], [0, 0, 1, 1], [], []>} : vector<32x16xf32>, vector<16x16xf32>, vector<32x16xf32> -> vector<32x16xf32>
    %c64 = arith.constant 64 : index
    %c0_16 = arith.constant 0 : index
    %12 = vector.load %arg8[%c64, %c0_16] : memref<608x16xf32, #tpu.memory_space<vmem>>, vector<32x16xf32>
    tpu.vector_store %arg8[%c64, %c0_16], %11 {strides = array<i32>} : memref<608x16xf32, #tpu.memory_space<vmem>>, vector<32x16xf32>,
    %c0_17 = arith.constant 0 : index
    %c3 = arith.constant 3 : index
    %c0_18 = arith.constant 0 : index
    %c0_19 = arith.constant 0 : index
    %13 = vector.load %arg4[%c0_17, %c3, %c0_18, %c0_19] : memref<1x19x16x16xf32, #tpu.memory_space<vmem>>, vector<1x1x16x16xf32>
    %14 = vector.shape_cast %13 : vector<1x1x16x16xf32> to vector<16x16xf32>
    %cst_20 = arith.constant dense<0.000000e+00> : vector<32x16xf32>
    %15 = tpu.matmul %0, %14, %cst_20 {dimension_numbers = #tpu.dot_dimension_numbers<[1], [0], [0], [1], [0, 0, 1, 1], [], []>} : vector<32x16xf32>, vector<16x16xf32>, vector<32x16xf32> -> vector<32x16xf32>
    %c96 = arith.constant 96 : index
    %c0_21 = arith.constant 0 : index
    %16 = vector.load %arg8[%c96, %c0_21] : memref<608x16xf32, #tpu.memory_space<vmem>>, vector<32x16xf32>
    tpu.vector_store %arg8[%c96, %c0_21], %15 {strides = array<i32>} : memref<608x16xf32, #tpu.memory_space<vmem>>, vector<32x16xf32>,
    %c0_22 = arith.constant 0 : index
    %c4 = arith.constant 4 : index
    %c0_23 = arith.constant 0 : index
    %c0_24 = arith.constant 0 : index
    %17 = vector.load %arg4[%c0_22, %c4, %c0_23, %c0_24] : memref<1x19x16x16xf32, #tpu.memory_space<vmem>>, vector<1x1x16x16xf32>
    %18 = vector.shape_cast %17 : vector<1x1x16x16xf32> to vector<16x16xf32>
    %cst_25 = arith.constant dense<0.000000e+00> : vector<32x16xf32>
    %19 = tpu.matmul %0, %18, %cst_25 {dimension_numbers = #tpu.dot_dimension_numbers<[1], [0], [0], [1], [0, 0, 1, 1], [], []>} : vector<32x16xf32>, vector<16x16xf32>, vector<32x16xf32> -> vector<32x16xf32>
    %c128 = arith.constant 128 : index
    %c0_26 = arith.constant 0 : index
    %20 = vector.load %arg8[%c128, %c0_26] : memref<608x16xf32, #tpu.memory_space<vmem>>, vector<32x16xf32>
    tpu.vector_store %arg8[%c128, %c0_26], %19 {strides = array<i32>} : memref<608x16xf32, #tpu.memory_space<vmem>>, vector<32x16xf32>,
    %c0_27 = arith.constant 0 : index
    %c5 = arith.constant 5 : index
    %c0_28 = arith.constant 0 : index
    %c0_29 = arith.constant 0 : index
    %21 = vector.load %arg4[%c0_27, %c5, %c0_28, %c0_29] : memref<1x19x16x16xf32, #tpu.memory_space<vmem>>, vector<1x1x16x16xf32>
    %22 = vector.shape_cast %21 : vector<1x1x16x16xf32> to vector<16x16xf32>
    %cst_30 = arith.constant dense<0.000000e+00> : vector<32x16xf32>
    %23 = tpu.matmul %0, %22, %cst_30 {dimension_numbers = #tpu.dot_dimension_numbers<[1], [0], [0], [1], [0, 0, 1, 1], [], []>} : vector<32x16xf32>, vector<16x16xf32>, vector<32x16xf32> -> vector<32x16xf32>
    %c160 = arith.constant 160 : index
    %c0_31 = arith.constant 0 : index
    %24 = vector.load %arg8[%c160, %c0_31] : memref<608x16xf32, #tpu.memory_space<vmem>>, vector<32x16xf32>
    tpu.vector_store %arg8[%c160, %c0_31], %23 {strides = array<i32>} : memref<608x16xf32, #tpu.memory_space<vmem>>, vector<32x16xf32>,
    %c0_32 = arith.constant 0 : index
    %c6 = arith.constant 6 : index
    %c0_33 = arith.constant 0 : index
    %c0_34 = arith.constant 0 : index
    %25 = vector.load %arg4[%c0_32, %c6, %c0_33, %c0_34] : memref<1x19x16x16xf32, #tpu.memory_space<vmem>>, vector<1x1x16x16xf32>
    %26 = vector.shape_cast %25 : vector<1x1x16x16xf32> to vector<16x16xf32>
    %cst_35 = arith.constant dense<0.000000e+00> : vector<32x16xf32>
    %27 = tpu.matmul %0, %26, %cst_35 {dimension_numbers = #tpu.dot_dimension_numbers<[1], [0], [0], [1], [0, 0, 1, 1], [], []>} : vector<32x16xf32>, vector<16x16xf32>, vector<32x16xf32> -> vector<32x16xf32>
    %c192 = arith.constant 192 : index
    %c0_36 = arith.constant 0 : index
    %28 = vector.load %arg8[%c192, %c0_36] : memref<608x16xf32, #tpu.memory_space<vmem>>, vector<32x16xf32>
    tpu.vector_store %arg8[%c192, %c0_36], %27 {strides = array<i32>} : memref<608x16xf32, #tpu.memory_space<vmem>>, vector<32x16xf32>,
    %c0_37 = arith.constant 0 : index
    %c7 = arith.constant 7 : index
    %c0_38 = arith.constant 0 : index
    %c0_39 = arith.constant 0 : index
    %29 = vector.load %arg4[%c0_37, %c7, %c0_38, %c0_39] : memref<1x19x16x16xf32, #tpu.memory_space<vmem>>, vector<1x1x16x16xf32>
    %30 = vector.shape_cast %29 : vector<1x1x16x16xf32> to vector<16x16xf32>
    %cst_40 = arith.constant dense<0.000000e+00> : vector<32x16xf32>
    %31 = tpu.matmul %0, %30, %cst_40 {dimension_numbers = #tpu.dot_dimension_numbers<[1], [0], [0], [1], [0, 0, 1, 1], [], []>} : vector<32x16xf32>, vector<16x16xf32>, vector<32x16xf32> -> vector<32x16xf32>
    %c224 = arith.constant 224 : index
    %c0_41 = arith.constant 0 : index
    %32 = vector.load %arg8[%c224, %c0_41] : memref<608x16xf32, #tpu.memory_space<vmem>>, vector<32x16xf32>
    tpu.vector_store %arg8[%c224, %c0_41], %31 {strides = array<i32>} : memref<608x16xf32, #tpu.memory_space<vmem>>, vector<32x16xf32>,
    %c0_42 = arith.constant 0 : index
    %c8 = arith.constant 8 : index
    %c0_43 = arith.constant 0 : index
    %c0_44 = arith.constant 0 : index
    %33 = vector.load %arg4[%c0_42, %c8, %c0_43, %c0_44] : memref<1x19x16x16xf32, #tpu.memory_space<vmem>>, vector<1x1x16x16xf32>
    %34 = vector.shape_cast %33 : vector<1x1x16x16xf32> to vector<16x16xf32>
    %cst_45 = arith.constant dense<0.000000e+00> : vector<32x16xf32>
    %35 = tpu.matmul %0, %34, %cst_45 {dimension_numbers = #tpu.dot_dimension_numbers<[1], [0], [0], [1], [0, 0, 1, 1], [], []>} : vector<32x16xf32>, vector<16x16xf32>, vector<32x16xf32> -> vector<32x16xf32>
    %c256 = arith.constant 256 : index
    %c0_46 = arith.constant 0 : index
    %36 = vector.load %arg8[%c256, %c0_46] : memref<608x16xf32, #tpu.memory_space<vmem>>, vector<32x16xf32>
    tpu.vector_store %arg8[%c256, %c0_46], %35 {strides = array<i32>} : memref<608x16xf32, #tpu.memory_space<vmem>>, vector<32x16xf32>,
    %c0_47 = arith.constant 0 : index
    %c9 = arith.constant 9 : index
    %c0_48 = arith.constant 0 : index
    %c0_49 = arith.constant 0 : index
    %37 = vector.load %arg4[%c0_47, %c9, %c0_48, %c0_49] : memref<1x19x16x16xf32, #tpu.memory_space<vmem>>, vector<1x1x16x16xf32>
    %38 = vector.shape_cast %37 : vector<1x1x16x16xf32> to vector<16x16xf32>
    %cst_50 = arith.constant dense<0.000000e+00> : vector<32x16xf32>
    %39 = tpu.matmul %0, %38, %cst_50 {dimension_numbers = #tpu.dot_dimension_numbers<[1], [0], [0], [1], [0, 0, 1, 1], [], []>} : vector<32x16xf32>, vector<16x16xf32>, vector<32x16xf32> -> vector<32x16xf32>
    %c288 = arith.constant 288 : index
    %c0_51 = arith.constant 0 : index
    %40 = vector.load %arg8[%c288, %c0_51] : memref<608x16xf32, #tpu.memory_space<vmem>>, vector<32x16xf32>
    tpu.vector_store %arg8[%c288, %c0_51], %39 {strides = array<i32>} : memref<608x16xf32, #tpu.memory_space<vmem>>, vector<32x16xf32>,
    %c0_52 = arith.constant 0 : index
    %c10 = arith.constant 10 : index
    %c0_53 = arith.constant 0 : index
    %c0_54 = arith.constant 0 : index
    %41 = vector.load %arg4[%c0_52, %c10, %c0_53, %c0_54] : memref<1x19x16x16xf32, #tpu.memory_space<vmem>>, vector<1x1x16x16xf32>
    %42 = vector.shape_cast %41 : vector<1x1x16x16xf32> to vector<16x16xf32>
    %cst_55 = arith.constant dense<0.000000e+00> : vector<32x16xf32>
    %43 = tpu.matmul %0, %42, %cst_55 {dimension_numbers = #tpu.dot_dimension_numbers<[1], [0], [0], [1], [0, 0, 1, 1], [], []>} : vector<32x16xf32>, vector<16x16xf32>, vector<32x16xf32> -> vector<32x16xf32>
    %c320 = arith.constant 320 : index
    %c0_56 = arith.constant 0 : index
    %44 = vector.load %arg8[%c320, %c0_56] : memref<608x16xf32, #tpu.memory_space<vmem>>, vector<32x16xf32>
    tpu.vector_store %arg8[%c320, %c0_56], %43 {strides = array<i32>} : memref<608x16xf32, #tpu.memory_space<vmem>>, vector<32x16xf32>,
    %c0_57 = arith.constant 0 : index
    %c11 = arith.constant 11 : index
    %c0_58 = arith.constant 0 : index
    %c0_59 = arith.constant 0 : index
    %45 = vector.load %arg4[%c0_57, %c11, %c0_58, %c0_59] : memref<1x19x16x16xf32, #tpu.memory_space<vmem>>, vector<1x1x16x16xf32>
    %46 = vector.shape_cast %45 : vector<1x1x16x16xf32> to vector<16x16xf32>
    %cst_60 = arith.constant dense<0.000000e+00> : vector<32x16xf32>
    %47 = tpu.matmul %0, %46, %cst_60 {dimension_numbers = #tpu.dot_dimension_numbers<[1], [0], [0], [1], [0, 0, 1, 1], [], []>} : vector<32x16xf32>, vector<16x16xf32>, vector<32x16xf32> -> vector<32x16xf32>
    %c352 = arith.constant 352 : index
    %c0_61 = arith.constant 0 : index
    %48 = vector.load %arg8[%c352, %c0_61] : memref<608x16xf32, #tpu.memory_space<vmem>>, vector<32x16xf32>
    tpu.vector_store %arg8[%c352, %c0_61], %47 {strides = array<i32>} : memref<608x16xf32, #tpu.memory_space<vmem>>, vector<32x16xf32>,
    %c0_62 = arith.constant 0 : index
    %c12 = arith.constant 12 : index
    %c0_63 = arith.constant 0 : index
    %c0_64 = arith.constant 0 : index
    %49 = vector.load %arg4[%c0_62, %c12, %c0_63, %c0_64] : memref<1x19x16x16xf32, #tpu.memory_space<vmem>>, vector<1x1x16x16xf32>
    %50 = vector.shape_cast %49 : vector<1x1x16x16xf32> to vector<16x16xf32>
    %cst_65 = arith.constant dense<0.000000e+00> : vector<32x16xf32>
    %51 = tpu.matmul %0, %50, %cst_65 {dimension_numbers = #tpu.dot_dimension_numbers<[1], [0], [0], [1], [0, 0, 1, 1], [], []>} : vector<32x16xf32>, vector<16x16xf32>, vector<32x16xf32> -> vector<32x16xf32>
    %c384 = arith.constant 384 : index
    %c0_66 = arith.constant 0 : index
    %52 = vector.load %arg8[%c384, %c0_66] : memref<608x16xf32, #tpu.memory_space<vmem>>, vector<32x16xf32>
    tpu.vector_store %arg8[%c384, %c0_66], %51 {strides = array<i32>} : memref<608x16xf32, #tpu.memory_space<vmem>>, vector<32x16xf32>,
    %c0_67 = arith.constant 0 : index
    %c13 = arith.constant 13 : index
    %c0_68 = arith.constant 0 : index
    %c0_69 = arith.constant 0 : index
    %53 = vector.load %arg4[%c0_67, %c13, %c0_68, %c0_69] : memref<1x19x16x16xf32, #tpu.memory_space<vmem>>, vector<1x1x16x16xf32>
    %54 = vector.shape_cast %53 : vector<1x1x16x16xf32> to vector<16x16xf32>
    %cst_70 = arith.constant dense<0.000000e+00> : vector<32x16xf32>
    %55 = tpu.matmul %0, %54, %cst_70 {dimension_numbers = #tpu.dot_dimension_numbers<[1], [0], [0], [1], [0, 0, 1, 1], [], []>} : vector<32x16xf32>, vector<16x16xf32>, vector<32x16xf32> -> vector<32x16xf32>
    %c416 = arith.constant 416 : index
    %c0_71 = arith.constant 0 : index
    %56 = vector.load %arg8[%c416, %c0_71] : memref<608x16xf32, #tpu.memory_space<vmem>>, vector<32x16xf32>
    tpu.vector_store %arg8[%c416, %c0_71], %55 {strides = array<i32>} : memref<608x16xf32, #tpu.memory_space<vmem>>, vector<32x16xf32>,
    %c0_72 = arith.constant 0 : index
    %c14 = arith.constant 14 : index
    %c0_73 = arith.constant 0 : index
    %c0_74 = arith.constant 0 : index
    %57 = vector.load %arg4[%c0_72, %c14, %c0_73, %c0_74] : memref<1x19x16x16xf32, #tpu.memory_space<vmem>>, vector<1x1x16x16xf32>
    %58 = vector.shape_cast %57 : vector<1x1x16x16xf32> to vector<16x16xf32>
    %cst_75 = arith.constant dense<0.000000e+00> : vector<32x16xf32>
    %59 = tpu.matmul %0, %58, %cst_75 {dimension_numbers = #tpu.dot_dimension_numbers<[1], [0], [0], [1], [0, 0, 1, 1], [], []>} : vector<32x16xf32>, vector<16x16xf32>, vector<32x16xf32> -> vector<32x16xf32>
    %c448 = arith.constant 448 : index
    %c0_76 = arith.constant 0 : index
    %60 = vector.load %arg8[%c448, %c0_76] : memref<608x16xf32, #tpu.memory_space<vmem>>, vector<32x16xf32>
    tpu.vector_store %arg8[%c448, %c0_76], %59 {strides = array<i32>} : memref<608x16xf32, #tpu.memory_space<vmem>>, vector<32x16xf32>,
    %c0_77 = arith.constant 0 : index
    %c15 = arith.constant 15 : index
    %c0_78 = arith.constant 0 : index
    %c0_79 = arith.constant 0 : index
    %61 = vector.load %arg4[%c0_77, %c15, %c0_78, %c0_79] : memref<1x19x16x16xf32, #tpu.memory_space<vmem>>, vector<1x1x16x16xf32>
    %62 = vector.shape_cast %61 : vector<1x1x16x16xf32> to vector<16x16xf32>
    %cst_80 = arith.constant dense<0.000000e+00> : vector<32x16xf32>
    %63 = tpu.matmul %0, %62, %cst_80 {dimension_numbers = #tpu.dot_dimension_numbers<[1], [0], [0], [1], [0, 0, 1, 1], [], []>} : vector<32x16xf32>, vector<16x16xf32>, vector<32x16xf32> -> vector<32x16xf32>
    %c480 = arith.constant 480 : index
    %c0_81 = arith.constant 0 : index
    %64 = vector.load %arg8[%c480, %c0_81] : memref<608x16xf32, #tpu.memory_space<vmem>>, vector<32x16xf32>
    tpu.vector_store %arg8[%c480, %c0_81], %63 {strides = array<i32>} : memref<608x16xf32, #tpu.memory_space<vmem>>, vector<32x16xf32>,
    %c0_82 = arith.constant 0 : index
    %c16 = arith.constant 16 : index
    %c0_83 = arith.constant 0 : index
    %c0_84 = arith.constant 0 : index
    %65 = vector.load %arg4[%c0_82, %c16, %c0_83, %c0_84] : memref<1x19x16x16xf32, #tpu.memory_space<vmem>>, vector<1x1x16x16xf32>
    %66 = vector.shape_cast %65 : vector<1x1x16x16xf32> to vector<16x16xf32>
    %cst_85 = arith.constant dense<0.000000e+00> : vector<32x16xf32>
    %67 = tpu.matmul %0, %66, %cst_85 {dimension_numbers = #tpu.dot_dimension_numbers<[1], [0], [0], [1], [0, 0, 1, 1], [], []>} : vector<32x16xf32>, vector<16x16xf32>, vector<32x16xf32> -> vector<32x16xf32>
    %c512 = arith.constant 512 : index
    %c0_86 = arith.constant 0 : index
    %68 = vector.load %arg8[%c512, %c0_86] : memref<608x16xf32, #tpu.memory_space<vmem>>, vector<32x16xf32>
    tpu.vector_store %arg8[%c512, %c0_86], %67 {strides = array<i32>} : memref<608x16xf32, #tpu.memory_space<vmem>>, vector<32x16xf32>,
    %c0_87 = arith.constant 0 : index
    %c17 = arith.constant 17 : index
    %c0_88 = arith.constant 0 : index
    %c0_89 = arith.constant 0 : index
    %69 = vector.load %arg4[%c0_87, %c17, %c0_88, %c0_89] : memref<1x19x16x16xf32, #tpu.memory_space<vmem>>, vector<1x1x16x16xf32>
    %70 = vector.shape_cast %69 : vector<1x1x16x16xf32> to vector<16x16xf32>
    %cst_90 = arith.constant dense<0.000000e+00> : vector<32x16xf32>
    %71 = tpu.matmul %0, %70, %cst_90 {dimension_numbers = #tpu.dot_dimension_numbers<[1], [0], [0], [1], [0, 0, 1, 1], [], []>} : vector<32x16xf32>, vector<16x16xf32>, vector<32x16xf32> -> vector<32x16xf32>
    %c544 = arith.constant 544 : index
    %c0_91 = arith.constant 0 : index
    %72 = vector.load %arg8[%c544, %c0_91] : memref<608x16xf32, #tpu.memory_space<vmem>>, vector<32x16xf32>
    tpu.vector_store %arg8[%c544, %c0_91], %71 {strides = array<i32>} : memref<608x16xf32, #tpu.memory_space<vmem>>, vector<32x16xf32>,
    %c0_92 = arith.constant 0 : index
    %c18 = arith.constant 18 : index
    %c0_93 = arith.constant 0 : index
    %c0_94 = arith.constant 0 : index
    %73 = vector.load %arg4[%c0_92, %c18, %c0_93, %c0_94] : memref<1x19x16x16xf32, #tpu.memory_space<vmem>>, vector<1x1x16x16xf32>
    %74 = vector.shape_cast %73 : vector<1x1x16x16xf32> to vector<16x16xf32>
    %cst_95 = arith.constant dense<0.000000e+00> : vector<32x16xf32>
    %75 = tpu.matmul %0, %74, %cst_95 {dimension_numbers = #tpu.dot_dimension_numbers<[1], [0], [0], [1], [0, 0, 1, 1], [], []>} : vector<32x16xf32>, vector<16x16xf32>, vector<32x16xf32> -> vector<32x16xf32>
    %c576 = arith.constant 576 : index
    %c0_96 = arith.constant 0 : index
    %76 = vector.load %arg8[%c576, %c0_96] : memref<608x16xf32, #tpu.memory_space<vmem>>, vector<32x16xf32>
    tpu.vector_store %arg8[%c576, %c0_96], %75 {strides = array<i32>} : memref<608x16xf32, #tpu.memory_space<vmem>>, vector<32x16xf32>,
    %c0_97 = arith.constant 0 : index
    %c0_98 = arith.constant 0 : index
    %77 = vector.load %arg8[%c0_97, %c0_98] : memref<608x16xf32, #tpu.memory_space<vmem>>, vector<608x16xf32>
    %c0_99 = arith.constant 0 : index
    %c0_100 = arith.constant 0 : index
    %78 = vector.load %arg3[%c0_99, %c0_100] : memref<16x32xf32, #tpu.memory_space<vmem>>, vector<16x32xf32>
    %cst_101 = arith.constant dense<0.000000e+00> : vector<608x32xf32>
    %79 = tpu.matmul %77, %78, %cst_101 {dimension_numbers = #tpu.dot_dimension_numbers<[1], [0], [0], [1], [0, 0, 1, 1], [], []>} : vector<608x16xf32>, vector<16x32xf32>, vector<608x32xf32> -> vector<608x32xf32>
    %80 = vector.shape_cast %79 : vector<608x32xf32> to vector<19x32x32xf32>
    %cst_102 = arith.constant dense<0xFF800000> : vector<32x32xf32>
    %81 = vector.multi_reduction <maximumf>, %80, %cst_102 [0] : vector<19x32x32xf32> to vector<32x32xf32>
    %82 = vector.shape_cast %81 : vector<32x32xf32> to vector<1x32x32xf32>
    %83 = vector.broadcast %82 : vector<1x32x32xf32> to vector<19x32x32xf32>
    %84 = arith.subf %80, %83 : vector<19x32x32xf32>
    %85 = math.exp %84 : vector<19x32x32xf32>
    %cst_103 = arith.constant dense<0.000000e+00> : vector<32x32xf32>
    %86 = vector.multi_reduction <add>, %85, %cst_103 [0] : vector<19x32x32xf32> to vector<32x32xf32>
    %c0_104 = arith.constant 0 : index
    %c0_105 = arith.constant 0 : index
    %c0_106 = arith.constant 0 : index
    %87 = vector.load %arg5[%c0_104, %c0_105, %c0_106] : memref<1x32x32xi32, #tpu.memory_space<vmem>>, vector<1x32x32xi32>
    %88 = vector.shape_cast %87 : vector<1x32x32xi32> to vector<32x32xi32>
    %89 = tpu.iota {dimensions = array<i32: 0>} : vector<19x32x32xi32>
    %90 = vector.shape_cast %88 : vector<32x32xi32> to vector<1x32x32xi32>
    %91 = vector.broadcast %90 : vector<1x32x32xi32> to vector<19x32x32xi32>
    %92 = arith.cmpi eq, %89, %91 : vector<19x32x32xi32>
    %cst_107 = arith.constant 0.000000e+00 : f32
    %93 = vector.broadcast %cst_107 : f32 to vector<19x32x32xf32>
    %94 = arith.select %92, %80, %93 : vector<19x32x32xi1>, vector<19x32x32xf32>
    %cst_108 = arith.constant dense<0.000000e+00> : vector<32x32xf32>
    %95 = vector.multi_reduction <add>, %94, %cst_108 [0] : vector<19x32x32xf32> to vector<32x32xf32>
    %96 = math.log %86 : vector<32x32xf32>
    %97 = arith.addf %81, %96 : vector<32x32xf32>
    %98 = arith.subf %97, %95 : vector<32x32xf32>
    %c0_109 = arith.constant 0 : index
    %c0_110 = arith.constant 0 : index
    %c0_111 = arith.constant 0 : index
    %99 = vector.load %arg6[%c0_109, %c0_110, %c0_111] : memref<1x32x32xf32, #tpu.memory_space<vmem>>, vector<1x32x32xf32>
    %100 = vector.shape_cast %99 : vector<1x32x32xf32> to vector<32x32xf32>
    %101 = vector.shape_cast %98 : vector<32x32xf32> to vector<1x32x32xf32>
    tpu.vector_store %arg6[%c0_109, %c0_110, %c0_111], %101 {strides = array<i32>} : memref<1x32x32xf32, #tpu.memory_space<vmem>>, vector<1x32x32xf32>,
    %cst_112 = arith.constant 0.000000e+00 : f32
    %102 = vector.broadcast %cst_112 : f32 to vector<32x32xf32>
    %103 = arith.subf %102, %98 : vector<32x32xf32>
    %104 = math.exp %103 : vector<32x32xf32>
    %c0_113 = arith.constant 0 : index
    %c0_114 = arith.constant 0 : index
    %c0_115 = arith.constant 0 : index
    %105 = vector.load %arg7[%c0_113, %c0_114, %c0_115] : memref<1x32x32xf32, #tpu.memory_space<vmem>>, vector<1x32x32xf32>
    %106 = vector.shape_cast %105 : vector<1x32x32xf32> to vector<32x32xf32>
    %107 = vector.shape_cast %104 : vector<32x32xf32> to vector<1x32x32xf32>
    tpu.vector_store %arg7[%c0_113, %c0_114, %c0_115], %107 {strides = array<i32>} : memref<1x32x32xf32, #tpu.memory_space<vmem>>, vector<1x32x32xf32>,
    return
  }
  func.func @transform_0(%arg0: i32, %arg1: i32) -> (i32, i32) {
    %c0_i32 = arith.constant 0 : i32
    %c0_i32_0 = arith.constant 0 : i32
    return %arg1, %c0_i32 : i32, i32
  }
  func.func @transform_1(%arg0: i32, %arg1: i32) -> (i32, i32) {
    %c0_i32 = arith.constant 0 : i32
    %c0_i32_0 = arith.constant 0 : i32
    %c0_i32_1 = arith.constant 0 : i32
    return %c0_i32, %c0_i32_0 : i32, i32
  }
  func.func @transform_2(%arg0: i32, %arg1: i32) -> (i32, i32, i32, i32) {
    %c0_i32 = arith.constant 0 : i32
    %c0_i32_0 = arith.constant 0 : i32
    %c0_i32_1 = arith.constant 0 : i32
    %c0_i32_2 = arith.constant 0 : i32
    return %arg0, %c0_i32, %c0_i32_0, %c0_i32_1 : i32, i32, i32, i32
  }
  func.func @transform_3(%arg0: i32, %arg1: i32) -> (i32, i32, i32) {
    %c0_i32 = arith.constant 0 : i32
    %c0_i32_0 = arith.constant 0 : i32
    return %arg0, %arg1, %c0_i32 : i32, i32, i32
  }
  func.func @transform_4(%arg0: i32, %arg1: i32) -> (i32, i32, i32) {
    %c0_i32 = arith.constant 0 : i32
    %c0_i32_0 = arith.constant 0 : i32
    return %arg0, %arg1, %c0_i32 : i32, i32, i32
  }
  func.func @transform_5(%arg0: i32, %arg1: i32) -> (i32, i32, i32) {
    %c0_i32 = arith.constant 0 : i32
    %c0_i32_0 = arith.constant 0 : i32
    return %arg0, %arg1, %c0_i32 : i32, i32, i32
  }
}

</mosaic_0001>

<llo_original>
// kernel: criterion_ohem_dsn.1
$region0: #{criterion_ohem_dsn.1}
  #allocation0 [shape = 'u32[]', space=smem, size = 0x4, offset = 0x4, fixed_abs, tag = 'smem constant byte address 0x4 - core index']
  #allocation1 [shape = 'u32[72,128]{1,0:T(1,128)}', space=vmem, size = 0x9000, scoped, tag = 'internal scratch']
  #allocation2 [shape = 'f32[608,16]{1,0:T(8,128)}', space=vmem, size = 0x4c000, scoped, tag = 'scratch operand']
  %s0 = inlined_call_operand.vmem [shape: f32[32,16], index: 0, kind: input, shape index: {}]
  %s1 = inlined_call_operand.vmem [shape: f32[16,32], index: 1, kind: input, shape index: {}]
  %s2 = inlined_call_operand.vmem [shape: f32[4,19,16,16], index: 2, kind: input, shape index: {}]
  %s3 = inlined_call_operand.vmem [shape: s32[4,32,32], index: 3, kind: input, shape index: {}]
  %s4 = inlined_call_operand.vmem [shape: f32[4,32,32], index: 4, kind: output, shape index: {0}]
  %s5 = inlined_call_operand.vmem [shape: f32[4,32,32], index: 5, kind: output, shape index: {1}]
  %6 = xla_tuple %s4, %s5
  %s7 = sld [smem:[#allocation0]]
  $region57: #{criterion_ohem_dsn.1} parent=0
    _
  %s9 = ssub.s32 1, %s7
  %s10 = scalar_select 0, %s9, %s7
  loop: start=0, step=1, limit=6
  $region2: #{criterion_ohem_dsn.1} parent=0 // loop_pre_header
    _
  $region3: #{criterion_ohem_dsn.1} parent=0 // loop_header
    %s12 = sphi 0, %s16
    %p13 = scmp.ge.s32.totalorder %s12, 6
    %s19 = sphi 0, %s31
    %s20 = sphi 0, %s27
    %s21 = sphi 0, %s19
    %s22 = sphi 0, %s20
    %s23 = sphi 0, %s21
    %s24 = sphi 0, %s22
    %s34 = sphi 0, %s36
    %s37 = sphi 0, %s34
    %s38 = sphi 0, %s37
    %s54 = sphi 0, %s38
    %s58 = sphi 0, %s58
    %s60 = sphi 0, %s58
    %s61 = sphi 0, %s60
    %s75 = sphi 0, %s61
    %s81 = sphi 0, %s83
    %s84 = sphi 0, %s81
    %s85 = sphi 0, %s84
    %s101 = sphi 0, %s85
    %s109 = sphi 0, %s111
    %s112 = sphi 0, %s109
    %s113 = sphi 0, %s112
    %s129 = sphi 0, %s113
    %s137 = sphi 0, %s139
    %s140 = sphi 0, %s137
    %s141 = sphi 0, %s140
    %s157 = sphi 0, %s141
    %s165 = sphi 0, %s167
    %s168 = sphi 0, %s165
    %s169 = sphi 0, %s168
    %s185 = sphi 0, %s169
  $region4: #{criterion_ohem_dsn.1} parent=0 // loop_header_branch
    %15 = sbr.rel (%p13) target = $region8
  $region5: #{criterion_ohem_dsn.1} parent=0 // loop_body
    %s17 = ssub.s32 %s12, 1
    %s18 = ssub.s32 %s12, 2
    %s25 = sadd.s32 1, %s20
    %p26 = scmp.ge.s32.totalorder %s25, 1
    %s27 = scalar_select %p26, 0, %s25
    %s28 = sadd.s32 1, %s19
    %s29 = scalar_select %p26, %s28, %s19
    %p30 = scmp.ge.s32.totalorder %s29, 4
    %s31 = scalar_select %p30, 0, %s29
    %s32 = ssub.s32 %s20, %s27
    %p33 = scmp.eq.s32.totalorder %s32, 0
    %s35 = sadd.s32 %s34, 1
    %s36 = scalar_select %p33, %s34, %s35
    %p39 = pneg %p33
    %p40 = scmp.eq.s32.totalorder %s12, 3
    %p41 = por %p39, %p40
    %p42 = scmp.ne.s32.totalorder %s34, %s37
    %p43 = scmp.eq.s32.totalorder %s12, 0
    %p44 = por %p42, %p43
    %p45 = scmp.ne.s32.totalorder %s34, %s37
    %p46 = scmp.eq.s32.totalorder %s17, 3
    %p47 = por %p45, %p46
    %p48 = scmp.ne.s32.totalorder %s37, %s38
    %p49 = scmp.eq.s32.totalorder %s17, 0
    %p50 = por %p48, %p49
    %p51 = scmp.ne.s32.totalorder %s37, %s38
    %p52 = scmp.eq.s32.totalorder %s18, 3
    %p53 = por %p51, %p52
    %p55 = scmp.ne.s32.totalorder %s38, %s54
    %p56 = scmp.eq.s32.totalorder %s18, 0
    %p57 = por %p55, %p56
    %s59 = sadd.s32 %s58, 1
    %p62 = scmp.eq.s32.totalorder %s12, 3
    %p63 = scmp.ne.s32.totalorder %s58, %s60
    %p64 = scmp.eq.s32.totalorder %s12, 0
    %p65 = por %p63, %p64
    %p66 = scmp.ne.s32.totalorder %s58, %s60
    %p67 = scmp.eq.s32.totalorder %s17, 3
    %p68 = por %p66, %p67
    %p69 = scmp.ne.s32.totalorder %s60, %s61
    %p70 = scmp.eq.s32.totalorder %s17, 0
    %p71 = por %p69, %p70
    %p72 = scmp.ne.s32.totalorder %s60, %s61
    %p73 = scmp.eq.s32.totalorder %s18, 3
    %p74 = por %p72, %p73
    %p76 = scmp.ne.s32.totalorder %s61, %s75
    %p77 = scmp.eq.s32.totalorder %s18, 0
    %p78 = por %p76, %p77
    %s79 = ssub.s32 %s19, %s31
    %p80 = scmp.eq.s32.totalorder %s79, 0
    %s82 = sadd.s32 %s81, 1
    %s83 = scalar_select %p80, %s81, %s82
    %p86 = pneg %p80
    %p87 = scmp.eq.s32.totalorder %s12, 3
    %p88 = por %p86, %p87
    %p89 = scmp.ne.s32.totalorder %s81, %s84
    %p90 = scmp.eq.s32.totalorder %s12, 0
    %p91 = por %p89, %p90
    %p92 = scmp.ne.s32.totalorder %s81, %s84
    %p93 = scmp.eq.s32.totalorder %s17, 3
    %p94 = por %p92, %p93
    %p95 = scmp.ne.s32.totalorder %s84, %s85
    %p96 = scmp.eq.s32.totalorder %s17, 0
    %p97 = por %p95, %p96
    %p98 = scmp.ne.s32.totalorder %s84, %s85
    %p99 = scmp.eq.s32.totalorder %s18, 3
    %p100 = por %p98, %p99
    %p102 = scmp.ne.s32.totalorder %s85, %s101
    %p103 = scmp.eq.s32.totalorder %s18, 0
    %p104 = por %p102, %p103
    %s105 = ssub.s32 %s19, %s31
    %s106 = ssub.s32 %s20, %s27
    %s107 = sor.u32 %s105, %s106
    %p108 = scmp.eq.s32.totalorder %s107, 0
    %s110 = sadd.s32 %s109, 1
    %s111 = scalar_select %p108, %s109, %s110
    %p114 = pneg %p108
    %p115 = scmp.eq.s32.totalorder %s12, 3
    %p116 = por %p114, %p115
    %p117 = scmp.ne.s32.totalorder %s109, %s112
    %p118 = scmp.eq.s32.totalorder %s12, 0
    %p119 = por %p117, %p118
    %p120 = scmp.ne.s32.totalorder %s109, %s112
    %p121 = scmp.eq.s32.totalorder %s17, 3
    %p122 = por %p120, %p121
    %p123 = scmp.ne.s32.totalorder %s112, %s113
    %p124 = scmp.eq.s32.totalorder %s17, 0
    %p125 = por %p123, %p124
    %p126 = scmp.ne.s32.totalorder %s112, %s113
    %p127 = scmp.eq.s32.totalorder %s18, 3
    %p128 = por %p126, %p127
    %p130 = scmp.ne.s32.totalorder %s113, %s129
    %p131 = scmp.eq.s32.totalorder %s18, 0
    %p132 = por %p130, %p131
    %s133 = ssub.s32 %s19, %s31
    %s134 = ssub.s32 %s20, %s27
    %s135 = sor.u32 %s133, %s134
    %p136 = scmp.eq.s32.totalorder %s135, 0
    %s138 = sadd.s32 %s137, 1
    %s139 = scalar_select %p136, %s137, %s138
    %p142 = pneg %p136
    %p143 = scmp.eq.s32.totalorder %s12, 3
    %p144 = por %p142, %p143
    %p145 = scmp.ne.s32.totalorder %s137, %s140
    %p146 = scmp.eq.s32.totalorder %s12, 0
    %p147 = por %p145, %p146
    %p148 = scmp.ne.s32.totalorder %s137, %s140
    %p149 = scmp.eq.s32.totalorder %s17, 3
    %p150 = por %p148, %p149
    %p151 = scmp.ne.s32.totalorder %s140, %s141
    %p152 = scmp.eq.s32.totalorder %s17, 0
    %p153 = por %p151, %p152
    %p154 = scmp.ne.s32.totalorder %s140, %s141
    %p155 = scmp.eq.s32.totalorder %s18, 3
    %p156 = por %p154, %p155
    %p158 = scmp.ne.s32.totalorder %s141, %s157
    %p159 = scmp.eq.s32.totalorder %s18, 0
    %p160 = por %p158, %p159
    %s161 = ssub.s32 %s19, %s31
    %s162 = ssub.s32 %s20, %s27
    %s163 = sor.u32 %s161, %s162
    %p164 = scmp.eq.s32.totalorder %s163, 0
    %s166 = sadd.s32 %s165, 1
    %s167 = scalar_select %p164, %s165, %s166
    %p170 = pneg %p164
    %p171 = scmp.eq.s32.totalorder %s12, 3
    %p172 = por %p170, %p171
    %p173 = scmp.ne.s32.totalorder %s165, %s168
    %p174 = scmp.eq.s32.totalorder %s12, 0
    %p175 = por %p173, %p174
    %p176 = scmp.ne.s32.totalorder %s165, %s168
    %p177 = scmp.eq.s32.totalorder %s17, 3
    %p178 = por %p176, %p177
    %p179 = scmp.ne.s32.totalorder %s168, %s169
    %p180 = scmp.eq.s32.totalorder %s17, 0
    %p181 = por %p179, %p180
    %p182 = scmp.ne.s32.totalorder %s168, %s169
    %p183 = scmp.eq.s32.totalorder %s18, 3
    %p184 = por %p182, %p183
    %p186 = scmp.ne.s32.totalorder %s169, %s185
    %p187 = scmp.eq.s32.totalorder %s18, 0
    %p188 = por %p186, %p187
    %p189 = scmp.le.s32.totalorder 1, %s12
    %p190 = scmp.lt.s32.totalorder %s12, 5
    %p191 = pnand %p189, %p190
    %p192 = pneg %p191
    // Predicated region
    $region9: #{criterion_ohem_dsn.1} parent=5 // pred_check
      _
    $region10: #{criterion_ohem_dsn.1} parent=5 // pred_check_branch
      %194 = sbr.rel (%p191) target = $region12
    $region11: #{criterion_ohem_dsn.1} parent=5 // pred_region
      %s195 = ssub.s32 %s12, 1
      // Predicated region
      $region13: #{criterion_ohem_dsn.1} parent=11 // pred_check
        %p196 = pneg %p50
      $region14: #{criterion_ohem_dsn.1} parent=11 // pred_check_branch
        %198 = sbr.rel (%p196) target = $region16
      $region15: #{criterion_ohem_dsn.1} parent=11 // pred_region
        %s199 = smul.u32 4, %s22
        %p200 = scmp.lt.s32.totalorder %s199, 3
        %s201 = scalar_select %p200, %s199, 3
        %s202 = smul.addr %s201, 8
        %s203 = scalar_lea.vmem %s0, %s202
        %s204 = smul.u32 4, %s22
      $region16: #{criterion_ohem_dsn.1} parent=11 // pred_fallthru
        _
      // Predicated region
      $region17: #{criterion_ohem_dsn.1} parent=11 // pred_check
        %p205 = pneg %p71
      $region18: #{criterion_ohem_dsn.1} parent=11 // pred_check_branch
        %207 = sbr.rel (%p205) target = $region20
      $region19: #{criterion_ohem_dsn.1} parent=11 // pred_region
        _
      $region20: #{criterion_ohem_dsn.1} parent=11 // pred_fallthru
        _
    $region12: #{criterion_ohem_dsn.1} parent=5 // pred_fallthru
      _
    %p208 = scmp.lt.s32.totalorder %s12, 4
    // Predicated region
    $region21: #{criterion_ohem_dsn.1} parent=5 // pred_check
      %p209 = pneg %p208
    $region22: #{criterion_ohem_dsn.1} parent=5 // pred_check_branch
      %211 = sbr.rel (%p209) target = $region24
    $region23: #{criterion_ohem_dsn.1} parent=5 // pred_region
      // Predicated region
      $region25: #{criterion_ohem_dsn.1} parent=23 // pred_check
        %p212 = pneg %p91
      $region26: #{criterion_ohem_dsn.1} parent=23 // pred_check_branch
        %214 = sbr.rel (%p212) target = $region28
      $region27: #{criterion_ohem_dsn.1} parent=23 // pred_region
        %p215 = scmp.lt.s32.totalorder %s19, 3
        %s216 = scalar_select %p215, %s19, 3
        %s217 = smul.addr %s216, 38
        %s218 = smul.addr %s217, 8
        %s219 = scalar_lea.vmem %s2, %s218
      $region28: #{criterion_ohem_dsn.1} parent=23 // pred_fallthru
        _
      // Predicated region
      $region29: #{criterion_ohem_dsn.1} parent=23 // pred_check
        %p220 = pneg %p119
      $region30: #{criterion_ohem_dsn.1} parent=23 // pred_check_branch
        %222 = sbr.rel (%p220) target = $region32
      $region31: #{criterion_ohem_dsn.1} parent=23 // pred_region
        %s223 = smul.u32 4, %s20
        %p224 = scmp.lt.s32.totalorder %s19, 3
        %s225 = scalar_select %p224, %s19, 3
        %p226 = scmp.lt.s32.totalorder %s223, 3
        %s227 = scalar_select %p226, %s223, 3
        %s228 = smul.addr %s225, 4
        %s229 = sadd.s32 %s227, %s228
        %s230 = smul.addr %s229, 8
        %s231 = scalar_lea.vmem %s3, %s230
        %s232 = smul.u32 4, %s20
      $region32: #{criterion_ohem_dsn.1} parent=23 // pred_fallthru
        _
    $region24: #{criterion_ohem_dsn.1} parent=5 // pred_fallthru
      _
    %p233 = scmp.le.s32.totalorder 1, %s12
    %p234 = scmp.lt.s32.totalorder %s12, 5
    %p235 = pnand %p233, %p234
    %p236 = pneg %p235
    // Predicated region
    $region33: #{criterion_ohem_dsn.1} parent=5 // pred_check
      _
    $region34: #{criterion_ohem_dsn.1} parent=5 // pred_check_branch
      %238 = sbr.rel (%p235) target = $region36
    $region35: #{criterion_ohem_dsn.1} parent=5 // pred_region
      %s239 = ssub.s32 %s12, 1
      %s240 = smul.u32 4, %s22
      %p241 = scmp.lt.s32.totalorder %s240, 3
      %s242 = scalar_select %p241, %s240, 3
      %s243 = smul.addr %s242, 8
      %s244 = scalar_lea.vmem %s0, %s243
      %p245 = pneg %p50
      %p246 = pneg %p47
      %p247 = pneg %p71
      %p248 = pneg %p68
      %p249 = scmp.lt.s32.totalorder %s21, 3
      %s250 = scalar_select %p249, %s21, 3
      %s251 = smul.addr %s250, 38
      %s252 = smul.addr %s251, 8
      %s253 = scalar_lea.vmem %s2, %s252
      %p254 = pneg %p97
      %p255 = pneg %p94
      %s256 = smul.u32 4, %s22
      %p257 = scmp.lt.s32.totalorder %s21, 3
      %s258 = scalar_select %p257, %s21, 3
      %p259 = scmp.lt.s32.totalorder %s256, 3
      %s260 = scalar_select %p259, %s256, 3
      %s261 = smul.addr %s258, 4
      %s262 = sadd.s32 %s260, %s261
      %s263 = smul.addr %s262, 8
      %s264 = scalar_lea.vmem %s3, %s263
      %p265 = pneg %p125
      %p266 = pneg %p122
      %p267 = pneg %p153
      %p268 = pneg %p150
      %s269 = smul.u32 4, %s22
      %p270 = scmp.lt.s32.totalorder %s21, 3
      %s271 = scalar_select %p270, %s21, 3
      %p272 = scmp.lt.s32.totalorder %s269, 3
      %s273 = scalar_select %p272, %s269, 3
      %s274 = smul.addr %s271, 4
      %s275 = sadd.s32 %s273, %s274
      %s276 = smul.addr %s275, 8
      %s277 = scalar_lea.vmem %s4, %s276
      %p278 = pneg %p181
      %p279 = pneg %p178
      %s280 = smul.u32 4, %s22
      %p281 = scmp.lt.s32.totalorder %s21, 3
      %s282 = scalar_select %p281, %s21, 3
      %p283 = scmp.lt.s32.totalorder %s280, 3
      %s284 = scalar_select %p283, %s280, 3
      %s285 = smul.addr %s282, 4
      %s286 = sadd.s32 %s284, %s285
      %s287 = smul.addr %s286, 8
      %s288 = scalar_lea.vmem %s5, %s287
      %s289 = smul.u32 4, %s22
      %p290 = scmp.lt.s32.totalorder %s289, 3
      %s291 = scalar_select %p290, %s289, 3
      %s292 = smul.addr %s291, 8
      %s293 = scalar_lea.vmem %s0, %s292
      %s294 = smul.u32 4, %s22
      %p295 = scmp.lt.s32.totalorder %s21, 3
      %s296 = scalar_select %p295, %s21, 3
      %s297 = smul.addr %s296, 38
      %s298 = smul.addr %s297, 8
      %s299 = scalar_lea.vmem %s2, %s298
      %s300 = smul.u32 4, %s22
      %p301 = scmp.lt.s32.totalorder %s21, 3
      %s302 = scalar_select %p301, %s21, 3
      %p303 = scmp.lt.s32.totalorder %s300, 3
      %s304 = scalar_select %p303, %s300, 3
      %s305 = smul.addr %s302, 4
      %s306 = sadd.s32 %s304, %s305
      %s307 = smul.addr %s306, 8
      %s308 = scalar_lea.vmem %s3, %s307
      %s309 = smul.u32 4, %s22
      %s310 = smul.u32 4, %s22
      %p311 = scmp.lt.s32.totalorder %s21, 3
      %s312 = scalar_select %p311, %s21, 3
      %p313 = scmp.lt.s32.totalorder %s310, 3
      %s314 = scalar_select %p313, %s310, 3
      %s315 = smul.addr %s312, 4
      %s316 = sadd.s32 %s314, %s315
      %s317 = smul.addr %s316, 8
      %s318 = scalar_lea.vmem %s4, %s317
      %s319 = smul.u32 4, %s22
      %s320 = smul.u32 4, %s22
      %p321 = scmp.lt.s32.totalorder %s21, 3
      %s322 = scalar_select %p321, %s21, 3
      %p323 = scmp.lt.s32.totalorder %s320, 3
      %s324 = scalar_select %p323, %s320, 3
      %s325 = smul.addr %s322, 4
      %s326 = sadd.s32 %s324, %s325
      %s327 = smul.addr %s326, 8
      %s328 = scalar_lea.vmem %s5, %s327
      %s329 = smul.u32 4, %s22
      %v330 = vld [vmem:[%s293] sm:$0xff]
      %v331 = vld [vmem:[%s293 + $0x8] sm:$0xff]
      %v332 = vld [vmem:[%s293 + $0x10] sm:$0xff]
      %v333 = vld [vmem:[%s293 + $0x18] sm:$0xff]
      %v334 = vld [vmem:[%s299] sm:$0xff]
      %v335 = vld [vmem:[%s299 + $0x8] sm:$0xff]
      %vm336 = vcmask 130048
      %v338 = vsel %vm336, %v330, 0
      %v341 = vsel %vm336, %v331, 0
      %v344 = vsel %vm336, %v332, 0
      %v347 = vsel %vm336, %v333, 0
      %349 = vmatpush.msra.mxu0 0.0
      %350 = vmatpush.msra.mxu0 0.0
      %351 = vmatpush.msra.mxu0 0.0
      %352 = vmatpush.msra.mxu0 0.0
      %353 = vmatpush.msra.mxu0 0.0
      %354 = vmatpush.msra.mxu0 0.0
      %355 = vmatpush.msra.mxu0 0.0
      %356 = vmatpush.msra.mxu0 0.0
      %357 = vmatpush.msra.mxu0 0.0
      %358 = vmatpush.msra.mxu0 0.0
      %359 = vmatpush.msra.mxu0 0.0
      %360 = vmatpush.msra.mxu0 0.0
      %361 = vmatpush.msra.mxu0 0.0
      %362 = vmatpush.msra.mxu0 0.0
      %363 = vmatpush.msra.mxu0 %v335
      %364 = vmatpush.msra.mxu0 %v334
      %365 = vmatmul.f32.gmra.mxu0 %v338
      %v366 = vpop.f32.mrf.mxu0
      %v367 = vadd.f32 0.0, %v366
      %368 = vmatmul.f32.gmra.mxu0 %v341
      %v369 = vpop.f32.mrf.mxu0
      %v370 = vadd.f32 0.0, %v369
      %371 = vmatmul.f32.gmra.mxu0 %v344
      %v372 = vpop.f32.mrf.mxu0
      %v373 = vadd.f32 0.0, %v372
      %374 = vmatmul.f32.gmra.mxu0 %v347
      %v375 = vpop.f32.mrf.mxu0
      %v376 = vadd.f32 0.0, %v375
      %377 = vdwg.mxu0
      %378 = vst.msk [vmem:[#allocation2] sm:$0xff] %vm336, %v367
      %379 = vst.msk [vmem:[#allocation2 + $0x8] sm:$0xff] %vm336, %v370
      %380 = vst.msk [vmem:[#allocation2 + $0x10] sm:$0xff] %vm336, %v373
      %381 = vst.msk [vmem:[#allocation2 + $0x18] sm:$0xff] %vm336, %v376
      %s382 = scalar_lea.vmem %s299, 16
      %v383 = vld [vmem:[%s382] sm:$0xff]
      %v384 = vld [vmem:[%s382 + $0x8] sm:$0xff]
      %385 = vmatpush.msra.mxu0 0.0
      %386 = vmatpush.msra.mxu0 0.0
      %387 = vmatpush.msra.mxu0 0.0
      %388 = vmatpush.msra.mxu0 0.0
      %389 = vmatpush.msra.mxu0 0.0
      %390 = vmatpush.msra.mxu0 0.0
      %391 = vmatpush.msra.mxu0 0.0
      %392 = vmatpush.msra.mxu0 0.0
      %393 = vmatpush.msra.mxu0 0.0
      %394 = vmatpush.msra.mxu0 0.0
      %395 = vmatpush.msra.mxu0 0.0
      %396 = vmatpush.msra.mxu0 0.0
      %397 = vmatpush.msra.mxu0 0.0
      %398 = vmatpush.msra.mxu0 0.0
      %399 = vmatpush.msra.mxu0 %v384
      %400 = vmatpush.msra.mxu0 %v383
      %401 = vmatmul.f32.gmra.mxu0 %v338
      %v402 = vpop.f32.mrf.mxu0
      %v403 = vadd.f32 0.0, %v402
      %404 = vmatmul.f32.gmra.mxu0 %v341
      %v405 = vpop.f32.mrf.mxu0
      %v406 = vadd.f32 0.0, %v405
      %407 = vmatmul.f32.gmra.mxu0 %v344
      %v408 = vpop.f32.mrf.mxu0
      %v409 = vadd.f32 0.0, %v408
      %410 = vmatmul.f32.gmra.mxu0 %v347
      %v411 = vpop.f32.mrf.mxu0
      %v412 = vadd.f32 0.0, %v411
      %413 = vdwg.mxu0
      %414 = vst.msk [vmem:[#allocation2 + $0x20] sm:$0xff] %vm336, %v403
      %415 = vst.msk [vmem:[#allocation2 + $0x28] sm:$0xff] %vm336, %v406
      %416 = vst.msk [vmem:[#allocation2 + $0x30] sm:$0xff] %vm336, %v409
      %417 = vst.msk [vmem:[#allocation2 + $0x38] sm:$0xff] %vm336, %v412
      %s418 = scalar_lea.vmem %s299, 32
      %v419 = vld [vmem:[%s418] sm:$0xff]
      %v420 = vld [vmem:[%s418 + $0x8] sm:$0xff]
      %421 = vmatpush.msra.mxu0 0.0
      %422 = vmatpush.msra.mxu0 0.0
      %423 = vmatpush.msra.mxu0 0.0
      %424 = vmatpush.msra.mxu0 0.0
      %425 = vmatpush.msra.mxu0 0.0
      %426 = vmatpush.msra.mxu0 0.0
      %427 = vmatpush.msra.mxu0 0.0
      %428 = vmatpush.msra.mxu0 0.0
      %429 = vmatpush.msra.mxu0 0.0
      %430 = vmatpush.msra.mxu0 0.0
      %431 = vmatpush.msra.mxu0 0.0
      %432 = vmatpush.msra.mxu0 0.0
      %433 = vmatpush.msra.mxu0 0.0
      %434 = vmatpush.msra.mxu0 0.0
      %435 = vmatpush.msra.mxu0 %v420
      %436 = vmatpush.msra.mxu0 %v419
      %437 = vmatmul.f32.gmra.mxu0 %v338
      %v438 = vpop.f32.mrf.mxu0
      %v439 = vadd.f32 0.0, %v438
      %440 = vmatmul.f32.gmra.mxu0 %v341
      %v441 = vpop.f32.mrf.mxu0
      %v442 = vadd.f32 0.0, %v441
      %443 = vmatmul.f32.gmra.mxu0 %v344
      %v444 = vpop.f32.mrf.mxu0
      %v445 = vadd.f32 0.0, %v444
      %446 = vmatmul.f32.gmra.mxu0 %v347
      %v447 = vpop.f32.mrf.mxu0
      %v448 = vadd.f32 0.0, %v447
      %449 = vdwg.mxu0
      %450 = vst.msk [vmem:[#allocation2 + $0x40] sm:$0xff] %vm336, %v439
      %451 = vst.msk [vmem:[#allocation2 + $0x48] sm:$0xff] %vm336, %v442
      %452 = vst.msk [vmem:[#allocation2 + $0x50] sm:$0xff] %vm336, %v445
      %453 = vst.msk [vmem:[#allocation2 + $0x58] sm:$0xff] %vm336, %v448
      %s454 = scalar_lea.vmem %s299, 48
      %v455 = vld [vmem:[%s454] sm:$0xff]
      %v456 = vld [vmem:[%s454 + $0x8] sm:$0xff]
      %457 = vmatpush.msra.mxu0 0.0
      %458 = vmatpush.msra.mxu0 0.0
      %459 = vmatpush.msra.mxu0 0.0
      %460 = vmatpush.msra.mxu0 0.0
      %461 = vmatpush.msra.mxu0 0.0
      %462 = vmatpush.msra.mxu0 0.0
      %463 = vmatpush.msra.mxu0 0.0
      %464 = vmatpush.msra.mxu0 0.0
      %465 = vmatpush.msra.mxu0 0.0
      %466 = vmatpush.msra.mxu0 0.0
      %467 = vmatpush.msra.mxu0 0.0
      %468 = vmatpush.msra.mxu0 0.0
      %469 = vmatpush.msra.mxu0 0.0
      %470 = vmatpush.msra.mxu0 0.0
      %471 = vmatpush.msra.mxu0 %v456
      %472 = vmatpush.msra.mxu0 %v455
      %473 = vmatmul.f32.gmra.mxu0 %v338
      %v474 = vpop.f32.mrf.mxu0
      %v475 = vadd.f32 0.0, %v474
      %476 = vmatmul.f32.gmra.mxu0 %v341
      %v477 = vpop.f32.mrf.mxu0
      %v478 = vadd.f32 0.0, %v477
      %479 = vmatmul.f32.gmra.mxu0 %v344
      %v480 = vpop.f32.mrf.mxu0
      %v481 = vadd.f32 0.0, %v480
      %482 = vmatmul.f32.gmra.mxu0 %v347
      %v483 = vpop.f32.mrf.mxu0
      %v484 = vadd.f32 0.0, %v483
      %485 = vdwg.mxu0
      %486 = vst.msk [vmem:[#allocation2 + $0x60] sm:$0xff] %vm336, %v475
      %487 = vst.msk [vmem:[#allocation2 + $0x68] sm:$0xff] %vm336, %v478
      %488 = vst.msk [vmem:[#allocation2 + $0x70] sm:$0xff] %vm336, %v481
      %489 = vst.msk [vmem:[#allocation2 + $0x78] sm:$0xff] %vm336, %v484
      %s490 = scalar_lea.vmem %s299, 64
      %v491 = vld [vmem:[%s490] sm:$0xff]
      %v492 = vld [vmem:[%s490 + $0x8] sm:$0xff]
      %493 = vmatpush.msra.mxu0 0.0
      %494 = vmatpush.msra.mxu0 0.0
      %495 = vmatpush.msra.mxu0 0.0
      %496 = vmatpush.msra.mxu0 0.0
      %497 = vmatpush.msra.mxu0 0.0
      %498 = vmatpush.msra.mxu0 0.0
      %499 = vmatpush.msra.mxu0 0.0
      %500 = vmatpush.msra.mxu0 0.0
      %501 = vmatpush.msra.mxu0 0.0
      %502 = vmatpush.msra.mxu0 0.0
      %503 = vmatpush.msra.mxu0 0.0
      %504 = vmatpush.msra.mxu0 0.0
      %505 = vmatpush.msra.mxu0 0.0
      %506 = vmatpush.msra.mxu0 0.0
      %507 = vmatpush.msra.mxu0 %v492
      %508 = vmatpush.msra.mxu0 %v491
      %509 = vmatmul.f32.gmra.mxu0 %v338
      %v510 = vpop.f32.mrf.mxu0
      %v511 = vadd.f32 0.0, %v510
      %512 = vmatmul.f32.gmra.mxu0 %v341
      %v513 = vpop.f32.mrf.mxu0
      %v514 = vadd.f32 0.0, %v513
      %515 = vmatmul.f32.gmra.mxu0 %v344
      %v516 = vpop.f32.mrf.mxu0
      %v517 = vadd.f32 0.0, %v516
      %518 = vmatmul.f32.gmra.mxu0 %v347
      %v519 = vpop.f32.mrf.mxu0
      %v520 = vadd.f32 0.0, %v519
      %521 = vdwg.mxu0
      %522 = vst.msk [vmem:[#allocation2 + $0x80] sm:$0xff] %vm336, %v511
      %523 = vst.msk [vmem:[#allocation2 + $0x88] sm:$0xff] %vm336, %v514
      %524 = vst.msk [vmem:[#allocation2 + $0x90] sm:$0xff] %vm336, %v517
      %525 = vst.msk [vmem:[#allocation2 + $0x98] sm:$0xff] %vm336, %v520
      %s526 = scalar_lea.vmem %s299, 80
      %v527 = vld [vmem:[%s526] sm:$0xff]
      %v528 = vld [vmem:[%s526 + $0x8] sm:$0xff]
      %529 = vmatpush.msra.mxu0 0.0
      %530 = vmatpush.msra.mxu0 0.0
      %531 = vmatpush.msra.mxu0 0.0
      %532 = vmatpush.msra.mxu0 0.0
      %533 = vmatpush.msra.mxu0 0.0
      %534 = vmatpush.msra.mxu0 0.0
      %535 = vmatpush.msra.mxu0 0.0
      %536 = vmatpush.msra.mxu0 0.0
      %537 = vmatpush.msra.mxu0 0.0
      %538 = vmatpush.msra.mxu0 0.0
      %539 = vmatpush.msra.mxu0 0.0
      %540 = vmatpush.msra.mxu0 0.0
      %541 = vmatpush.msra.mxu0 0.0
      %542 = vmatpush.msra.mxu0 0.0
      %543 = vmatpush.msra.mxu0 %v528
      %544 = vmatpush.msra.mxu0 %v527
      %545 = vmatmul.f32.gmra.mxu0 %v338
      %v546 = vpop.f32.mrf.mxu0
      %v547 = vadd.f32 0.0, %v546
      %548 = vmatmul.f32.gmra.mxu0 %v341
      %v549 = vpop.f32.mrf.mxu0
      %v550 = vadd.f32 0.0, %v549
      %551 = vmatmul.f32.gmra.mxu0 %v344
      %v552 = vpop.f32.mrf.mxu0
      %v553 = vadd.f32 0.0, %v552
      %554 = vmatmul.f32.gmra.mxu0 %v347
      %v555 = vpop.f32.mrf.mxu0
      %v556 = vadd.f32 0.0, %v555
      %557 = vdwg.mxu0
      %558 = vst.msk [vmem:[#allocation2 + $0xa0] sm:$0xff] %vm336, %v547
      %559 = vst.msk [vmem:[#allocation2 + $0xa8] sm:$0xff] %vm336, %v550
      %560 = vst.msk [vmem:[#allocation2 + $0xb0] sm:$0xff] %vm336, %v553
      %561 = vst.msk [vmem:[#allocation2 + $0xb8] sm:$0xff] %vm336, %v556
      %s562 = scalar_lea.vmem %s299, 96
      %v563 = vld [vmem:[%s562] sm:$0xff]
      %v564 = vld [vmem:[%s562 + $0x8] sm:$0xff]
      %565 = vmatpush.msra.mxu0 0.0
      %566 = vmatpush.msra.mxu0 0.0
      %567 = vmatpush.msra.mxu0 0.0
      %568 = vmatpush.msra.mxu0 0.0
      %569 = vmatpush.msra.mxu0 0.0
      %570 = vmatpush.msra.mxu0 0.0
      %571 = vmatpush.msra.mxu0 0.0
      %572 = vmatpush.msra.mxu0 0.0
      %573 = vmatpush.msra.mxu0 0.0
      %574 = vmatpush.msra.mxu0 0.0
      %575 = vmatpush.msra.mxu0 0.0
      %576 = vmatpush.msra.mxu0 0.0
      %577 = vmatpush.msra.mxu0 0.0
      %578 = vmatpush.msra.mxu0 0.0
      %579 = vmatpush.msra.mxu0 %v564
      %580 = vmatpush.msra.mxu0 %v563
      %581 = vmatmul.f32.gmra.mxu0 %v338
      %v582 = vpop.f32.mrf.mxu0
      %v583 = vadd.f32 0.0, %v582
      %584 = vmatmul.f32.gmra.mxu0 %v341
      %v585 = vpop.f32.mrf.mxu0
      %v586 = vadd.f32 0.0, %v585
      %587 = vmatmul.f32.gmra.mxu0 %v344
      %v588 = vpop.f32.mrf.mxu0
      %v589 = vadd.f32 0.0, %v588
      %590 = vmatmul.f32.gmra.mxu0 %v347
      %v591 = vpop.f32.mrf.mxu0
      %v592 = vadd.f32 0.0, %v591
      %593 = vdwg.mxu0
      %594 = vst.msk [vmem:[#allocation2 + $0xc0] sm:$0xff] %vm336, %v583
      %595 = vst.msk [vmem:[#allocation2 + $0xc8] sm:$0xff] %vm336, %v586
      %596 = vst.msk [vmem:[#allocation2 + $0xd0] sm:$0xff] %vm336, %v589
      %597 = vst.msk [vmem:[#allocation2 + $0xd8] sm:$0xff] %vm336, %v592
      %s598 = scalar_lea.vmem %s299, 112
      %v599 = vld [vmem:[%s598] sm:$0xff]
      %v600 = vld [vmem:[%s598 + $0x8] sm:$0xff]
      %601 = vmatpush.msra.mxu0 0.0
      %602 = vmatpush.msra.mxu0 0.0
      %603 = vmatpush.msra.mxu0 0.0
      %604 = vmatpush.msra.mxu0 0.0
      %605 = vmatpush.msra.mxu0 0.0
      %606 = vmatpush.msra.mxu0 0.0
      %607 = vmatpush.msra.mxu0 0.0
      %608 = vmatpush.msra.mxu0 0.0
      %609 = vmatpush.msra.mxu0 0.0
      %610 = vmatpush.msra.mxu0 0.0
      %611 = vmatpush.msra.mxu0 0.0
      %612 = vmatpush.msra.mxu0 0.0
      %613 = vmatpush.msra.mxu0 0.0
      %614 = vmatpush.msra.mxu0 0.0
      %615 = vmatpush.msra.mxu0 %v600
      %616 = vmatpush.msra.mxu0 %v599
      %617 = vmatmul.f32.gmra.mxu0 %v338
      %v618 = vpop.f32.mrf.mxu0
      %v619 = vadd.f32 0.0, %v618
      %620 = vmatmul.f32.gmra.mxu0 %v341
      %v621 = vpop.f32.mrf.mxu0
      %v622 = vadd.f32 0.0, %v621
      %623 = vmatmul.f32.gmra.mxu0 %v344
      %v624 = vpop.f32.mrf.mxu0
      %v625 = vadd.f32 0.0, %v624
      %626 = vmatmul.f32.gmra.mxu0 %v347
      %v627 = vpop.f32.mrf.mxu0
      %v628 = vadd.f32 0.0, %v627
      %629 = vdwg.mxu0
      %630 = vst.msk [vmem:[#allocation2 + $0xe0] sm:$0xff] %vm336, %v619
      %631 = vst.msk [vmem:[#allocation2 + $0xe8] sm:$0xff] %vm336, %v622
      %632 = vst.msk [vmem:[#allocation2 + $0xf0] sm:$0xff] %vm336, %v625
      %633 = vst.msk [vmem:[#allocation2 + $0xf8] sm:$0xff] %vm336, %v628
      %s634 = scalar_lea.vmem %s299, 128
      %v635 = vld [vmem:[%s634] sm:$0xff]
      %v636 = vld [vmem:[%s634 + $0x8] sm:$0xff]
      %637 = vmatpush.msra.mxu0 0.0
      %638 = vmatpush.msra.mxu0 0.0
      %639 = vmatpush.msra.mxu0 0.0
      %640 = vmatpush.msra.mxu0 0.0
      %641 = vmatpush.msra.mxu0 0.0
      %642 = vmatpush.msra.mxu0 0.0
      %643 = vmatpush.msra.mxu0 0.0
      %644 = vmatpush.msra.mxu0 0.0
      %645 = vmatpush.msra.mxu0 0.0
      %646 = vmatpush.msra.mxu0 0.0
      %647 = vmatpush.msra.mxu0 0.0
      %648 = vmatpush.msra.mxu0 0.0
      %649 = vmatpush.msra.mxu0 0.0
      %650 = vmatpush.msra.mxu0 0.0
      %651 = vmatpush.msra.mxu0 %v636
      %652 = vmatpush.msra.mxu0 %v635
      %653 = vmatmul.f32.gmra.mxu0 %v338
      %v654 = vpop.f32.mrf.mxu0
      %v655 = vadd.f32 0.0, %v654
      %656 = vmatmul.f32.gmra.mxu0 %v341
      %v657 = vpop.f32.mrf.mxu0
      %v658 = vadd.f32 0.0, %v657
      %659 = vmatmul.f32.gmra.mxu0 %v344
      %v660 = vpop.f32.mrf.mxu0
      %v661 = vadd.f32 0.0, %v660
      %662 = vmatmul.f32.gmra.mxu0 %v347
      %v663 = vpop.f32.mrf.mxu0
      %v664 = vadd.f32 0.0, %v663
      %665 = vdwg.mxu0
      %666 = vst.msk [vmem:[#allocation2 + $0x100] sm:$0xff] %vm336, %v655
      %667 = vst.msk [vmem:[#allocation2 + $0x108] sm:$0xff] %vm336, %v658
      %668 = vst.msk [vmem:[#allocation2 + $0x110] sm:$0xff] %vm336, %v661
      %669 = vst.msk [vmem:[#allocation2 + $0x118] sm:$0xff] %vm336, %v664
      %s670 = scalar_lea.vmem %s299, 144
      %v671 = vld [vmem:[%s670] sm:$0xff]
      %v672 = vld [vmem:[%s670 + $0x8] sm:$0xff]
      %673 = vmatpush.msra.mxu0 0.0
      %674 = vmatpush.msra.mxu0 0.0
      %675 = vmatpush.msra.mxu0 0.0
      %676 = vmatpush.msra.mxu0 0.0
      %677 = vmatpush.msra.mxu0 0.0
      %678 = vmatpush.msra.mxu0 0.0
      %679 = vmatpush.msra.mxu0 0.0
      %680 = vmatpush.msra.mxu0 0.0
      %681 = vmatpush.msra.mxu0 0.0
      %682 = vmatpush.msra.mxu0 0.0
      %683 = vmatpush.msra.mxu0 0.0
      %684 = vmatpush.msra.mxu0 0.0
      %685 = vmatpush.msra.mxu0 0.0
      %686 = vmatpush.msra.mxu0 0.0
      %687 = vmatpush.msra.mxu0 %v672
      %688 = vmatpush.msra.mxu0 %v671
      %689 = vmatmul.f32.gmra.mxu0 %v338
      %v690 = vpop.f32.mrf.mxu0
      %v691 = vadd.f32 0.0, %v690
      %692 = vmatmul.f32.gmra.mxu0 %v341
      %v693 = vpop.f32.mrf.mxu0
      %v694 = vadd.f32 0.0, %v693
      %695 = vmatmul.f32.gmra.mxu0 %v344
      %v696 = vpop.f32.mrf.mxu0
      %v697 = vadd.f32 0.0, %v696
      %698 = vmatmul.f32.gmra.mxu0 %v347
      %v699 = vpop.f32.mrf.mxu0
      %v700 = vadd.f32 0.0, %v699
      %701 = vdwg.mxu0
      %702 = vst.msk [vmem:[#allocation2 + $0x120] sm:$0xff] %vm336, %v691
      %703 = vst.msk [vmem:[#allocation2 + $0x128] sm:$0xff] %vm336, %v694
      %704 = vst.msk [vmem:[#allocation2 + $0x130] sm:$0xff] %vm336, %v697
      %705 = vst.msk [vmem:[#allocation2 + $0x138] sm:$0xff] %vm336, %v700
      %s706 = scalar_lea.vmem %s299, 160
      %v707 = vld [vmem:[%s706] sm:$0xff]
      %v708 = vld [vmem:[%s706 + $0x8] sm:$0xff]
      %709 = vmatpush.msra.mxu0 0.0
      %710 = vmatpush.msra.mxu0 0.0
      %711 = vmatpush.msra.mxu0 0.0
      %712 = vmatpush.msra.mxu0 0.0
      %713 = vmatpush.msra.mxu0 0.0
      %714 = vmatpush.msra.mxu0 0.0
      %715 = vmatpush.msra.mxu0 0.0
      %716 = vmatpush.msra.mxu0 0.0
      %717 = vmatpush.msra.mxu0 0.0
      %718 = vmatpush.msra.mxu0 0.0
      %719 = vmatpush.msra.mxu0 0.0
      %720 = vmatpush.msra.mxu0 0.0
      %721 = vmatpush.msra.mxu0 0.0
      %722 = vmatpush.msra.mxu0 0.0
      %723 = vmatpush.msra.mxu0 %v708
      %724 = vmatpush.msra.mxu0 %v707
      %725 = vmatmul.f32.gmra.mxu0 %v338
      %v726 = vpop.f32.mrf.mxu0
      %v727 = vadd.f32 0.0, %v726
      %728 = vmatmul.f32.gmra.mxu0 %v341
      %v729 = vpop.f32.mrf.mxu0
      %v730 = vadd.f32 0.0, %v729
      %731 = vmatmul.f32.gmra.mxu0 %v344
      %v732 = vpop.f32.mrf.mxu0
      %v733 = vadd.f32 0.0, %v732
      %734 = vmatmul.f32.gmra.mxu0 %v347
      %v735 = vpop.f32.mrf.mxu0
      %v736 = vadd.f32 0.0, %v735
      %737 = vdwg.mxu0
      %738 = vst.msk [vmem:[#allocation2 + $0x140] sm:$0xff] %vm336, %v727
      %739 = vst.msk [vmem:[#allocation2 + $0x148] sm:$0xff] %vm336, %v730
      %740 = vst.msk [vmem:[#allocation2 + $0x150] sm:$0xff] %vm336, %v733
      %741 = vst.msk [vmem:[#allocation2 + $0x158] sm:$0xff] %vm336, %v736
      %s742 = scalar_lea.vmem %s299, 176
      %v743 = vld [vmem:[%s742] sm:$0xff]
      %v744 = vld [vmem:[%s742 + $0x8] sm:$0xff]
      %745 = vmatpush.msra.mxu0 0.0
      %746 = vmatpush.msra.mxu0 0.0
      %747 = vmatpush.msra.mxu0 0.0
      %748 = vmatpush.msra.mxu0 0.0
      %749 = vmatpush.msra.mxu0 0.0
      %750 = vmatpush.msra.mxu0 0.0
      %751 = vmatpush.msra.mxu0 0.0
      %752 = vmatpush.msra.mxu0 0.0
      %753 = vmatpush.msra.mxu0 0.0
      %754 = vmatpush.msra.mxu0 0.0
      %755 = vmatpush.msra.mxu0 0.0
      %756 = vmatpush.msra.mxu0 0.0
      %757 = vmatpush.msra.mxu0 0.0
      %758 = vmatpush.msra.mxu0 0.0
      %759 = vmatpush.msra.mxu0 %v744
      %760 = vmatpush.msra.mxu0 %v743
      %761 = vmatmul.f32.gmra.mxu0 %v338
      %v762 = vpop.f32.mrf.mxu0
      %v763 = vadd.f32 0.0, %v762
      %764 = vmatmul.f32.gmra.mxu0 %v341
      %v765 = vpop.f32.mrf.mxu0
      %v766 = vadd.f32 0.0, %v765
      %767 = vmatmul.f32.gmra.mxu0 %v344
      %v768 = vpop.f32.mrf.mxu0
      %v769 = vadd.f32 0.0, %v768
      %770 = vmatmul.f32.gmra.mxu0 %v347
      %v771 = vpop.f32.mrf.mxu0
      %v772 = vadd.f32 0.0, %v771
      %773 = vdwg.mxu0
      %774 = vst.msk [vmem:[#allocation2 + $0x160] sm:$0xff] %vm336, %v763
      %775 = vst.msk [vmem:[#allocation2 + $0x168] sm:$0xff] %vm336, %v766
      %776 = vst.msk [vmem:[#allocation2 + $0x170] sm:$0xff] %vm336, %v769
      %777 = vst.msk [vmem:[#allocation2 + $0x178] sm:$0xff] %vm336, %v772
      %s778 = scalar_lea.vmem %s299, 192
      %v779 = vld [vmem:[%s778] sm:$0xff]
      %v780 = vld [vmem:[%s778 + $0x8] sm:$0xff]
      %781 = vmatpush.msra.mxu0 0.0
      %782 = vmatpush.msra.mxu0 0.0
      %783 = vmatpush.msra.mxu0 0.0
      %784 = vmatpush.msra.mxu0 0.0
      %785 = vmatpush.msra.mxu0 0.0
      %786 = vmatpush.msra.mxu0 0.0
      %787 = vmatpush.msra.mxu0 0.0
      %788 = vmatpush.msra.mxu0 0.0
      %789 = vmatpush.msra.mxu0 0.0
      %790 = vmatpush.msra.mxu0 0.0
      %791 = vmatpush.msra.mxu0 0.0
      %792 = vmatpush.msra.mxu0 0.0
      %793 = vmatpush.msra.mxu0 0.0
      %794 = vmatpush.msra.mxu0 0.0
      %795 = vmatpush.msra.mxu0 %v780
      %796 = vmatpush.msra.mxu0 %v779
      %797 = vmatmul.f32.gmra.mxu0 %v338
      %v798 = vpop.f32.mrf.mxu0
      %v799 = vadd.f32 0.0, %v798
      %800 = vmatmul.f32.gmra.mxu0 %v341
      %v801 = vpop.f32.mrf.mxu0
      %v802 = vadd.f32 0.0, %v801
      %803 = vmatmul.f32.gmra.mxu0 %v344
      %v804 = vpop.f32.mrf.mxu0
      %v805 = vadd.f32 0.0, %v804
      %806 = vmatmul.f32.gmra.mxu0 %v347
      %v807 = vpop.f32.mrf.mxu0
      %v808 = vadd.f32 0.0, %v807
      %809 = vdwg.mxu0
      %810 = vst.msk [vmem:[#allocation2 + $0x180] sm:$0xff] %vm336, %v799
      %811 = vst.msk [vmem:[#allocation2 + $0x188] sm:$0xff] %vm336, %v802
      %812 = vst.msk [vmem:[#allocation2 + $0x190] sm:$0xff] %vm336, %v805
      %813 = vst.msk [vmem:[#allocation2 + $0x198] sm:$0xff] %vm336, %v808
      %s814 = scalar_lea.vmem %s299, 208
      %v815 = vld [vmem:[%s814] sm:$0xff]
      %v816 = vld [vmem:[%s814 + $0x8] sm:$0xff]
      %817 = vmatpush.msra.mxu0 0.0
      %818 = vmatpush.msra.mxu0 0.0
      %819 = vmatpush.msra.mxu0 0.0
      %820 = vmatpush.msra.mxu0 0.0
      %821 = vmatpush.msra.mxu0 0.0
      %822 = vmatpush.msra.mxu0 0.0
      %823 = vmatpush.msra.mxu0 0.0
      %824 = vmatpush.msra.mxu0 0.0
      %825 = vmatpush.msra.mxu0 0.0
      %826 = vmatpush.msra.mxu0 0.0
      %827 = vmatpush.msra.mxu0 0.0
      %828 = vmatpush.msra.mxu0 0.0
      %829 = vmatpush.msra.mxu0 0.0
      %830 = vmatpush.msra.mxu0 0.0
      %831 = vmatpush.msra.mxu0 %v816
      %832 = vmatpush.msra.mxu0 %v815
      %833 = vmatmul.f32.gmra.mxu0 %v338
      %v834 = vpop.f32.mrf.mxu0
      %v835 = vadd.f32 0.0, %v834
      %836 = vmatmul.f32.gmra.mxu0 %v341
      %v837 = vpop.f32.mrf.mxu0
      %v838 = vadd.f32 0.0, %v837
      %839 = vmatmul.f32.gmra.mxu0 %v344
      %v840 = vpop.f32.mrf.mxu0
      %v841 = vadd.f32 0.0, %v840
      %842 = vmatmul.f32.gmra.mxu0 %v347
      %v843 = vpop.f32.mrf.mxu0
      %v844 = vadd.f32 0.0, %v843
      %845 = vdwg.mxu0
      %846 = vst.msk [vmem:[#allocation2 + $0x1a0] sm:$0xff] %vm336, %v835
      %847 = vst.msk [vmem:[#allocation2 + $0x1a8] sm:$0xff] %vm336, %v838
      %848 = vst.msk [vmem:[#allocation2 + $0x1b0] sm:$0xff] %vm336, %v841
      %849 = vst.msk [vmem:[#allocation2 + $0x1b8] sm:$0xff] %vm336, %v844
      %s850 = scalar_lea.vmem %s299, 224
      %v851 = vld [vmem:[%s850] sm:$0xff]
      %v852 = vld [vmem:[%s850 + $0x8] sm:$0xff]
      %853 = vmatpush.msra.mxu0 0.0
      %854 = vmatpush.msra.mxu0 0.0
      %855 = vmatpush.msra.mxu0 0.0
      %856 = vmatpush.msra.mxu0 0.0
      %857 = vmatpush.msra.mxu0 0.0
      %858 = vmatpush.msra.mxu0 0.0
      %859 = vmatpush.msra.mxu0 0.0
      %860 = vmatpush.msra.mxu0 0.0
      %861 = vmatpush.msra.mxu0 0.0
      %862 = vmatpush.msra.mxu0 0.0
      %863 = vmatpush.msra.mxu0 0.0
      %864 = vmatpush.msra.mxu0 0.0
      %865 = vmatpush.msra.mxu0 0.0
      %866 = vmatpush.msra.mxu0 0.0
      %867 = vmatpush.msra.mxu0 %v852
      %868 = vmatpush.msra.mxu0 %v851
      %869 = vmatmul.f32.gmra.mxu0 %v338
      %v870 = vpop.f32.mrf.mxu0
      %v871 = vadd.f32 0.0, %v870
      %872 = vmatmul.f32.gmra.mxu0 %v341
      %v873 = vpop.f32.mrf.mxu0
      %v874 = vadd.f32 0.0, %v873
      %875 = vmatmul.f32.gmra.mxu0 %v344
      %v876 = vpop.f32.mrf.mxu0
      %v877 = vadd.f32 0.0, %v876
      %878 = vmatmul.f32.gmra.mxu0 %v347
      %v879 = vpop.f32.mrf.mxu0
      %v880 = vadd.f32 0.0, %v879
      %881 = vdwg.mxu0
      %882 = vst.msk [vmem:[#allocation2 + $0x1c0] sm:$0xff] %vm336, %v871
      %883 = vst.msk [vmem:[#allocation2 + $0x1c8] sm:$0xff] %vm336, %v874
      %884 = vst.msk [vmem:[#allocation2 + $0x1d0] sm:$0xff] %vm336, %v877
      %885 = vst.msk [vmem:[#allocation2 + $0x1d8] sm:$0xff] %vm336, %v880
      %s886 = scalar_lea.vmem %s299, 240
      %v887 = vld [vmem:[%s886] sm:$0xff]
      %v888 = vld [vmem:[%s886 + $0x8] sm:$0xff]
      %889 = vmatpush.msra.mxu0 0.0
      %890 = vmatpush.msra.mxu0 0.0
      %891 = vmatpush.msra.mxu0 0.0
      %892 = vmatpush.msra.mxu0 0.0
      %893 = vmatpush.msra.mxu0 0.0
      %894 = vmatpush.msra.mxu0 0.0
      %895 = vmatpush.msra.mxu0 0.0
      %896 = vmatpush.msra.mxu0 0.0
      %897 = vmatpush.msra.mxu0 0.0
      %898 = vmatpush.msra.mxu0 0.0
      %899 = vmatpush.msra.mxu0 0.0
      %900 = vmatpush.msra.mxu0 0.0
      %901 = vmatpush.msra.mxu0 0.0
      %902 = vmatpush.msra.mxu0 0.0
      %903 = vmatpush.msra.mxu0 %v888
      %904 = vmatpush.msra.mxu0 %v887
      %905 = vmatmul.f32.gmra.mxu0 %v338
      %v906 = vpop.f32.mrf.mxu0
      %v907 = vadd.f32 0.0, %v906
      %908 = vmatmul.f32.gmra.mxu0 %v341
      %v909 = vpop.f32.mrf.mxu0
      %v910 = vadd.f32 0.0, %v909
      %911 = vmatmul.f32.gmra.mxu0 %v344
      %v912 = vpop.f32.mrf.mxu0
      %v913 = vadd.f32 0.0, %v912
      %914 = vmatmul.f32.gmra.mxu0 %v347
      %v915 = vpop.f32.mrf.mxu0
      %v916 = vadd.f32 0.0, %v915
      %917 = vdwg.mxu0
      %918 = vst.msk [vmem:[#allocation2 + $0x1e0] sm:$0xff] %vm336, %v907
      %919 = vst.msk [vmem:[#allocation2 + $0x1e8] sm:$0xff] %vm336, %v910
      %920 = vst.msk [vmem:[#allocation2 + $0x1f0] sm:$0xff] %vm336, %v913
      %921 = vst.msk [vmem:[#allocation2 + $0x1f8] sm:$0xff] %vm336, %v916
      %s922 = scalar_lea.vmem %s299, 256
      %v923 = vld [vmem:[%s922] sm:$0xff]
      %v924 = vld [vmem:[%s922 + $0x8] sm:$0xff]
      %925 = vmatpush.msra.mxu0 0.0
      %926 = vmatpush.msra.mxu0 0.0
      %927 = vmatpush.msra.mxu0 0.0
      %928 = vmatpush.msra.mxu0 0.0
      %929 = vmatpush.msra.mxu0 0.0
      %930 = vmatpush.msra.mxu0 0.0
      %931 = vmatpush.msra.mxu0 0.0
      %932 = vmatpush.msra.mxu0 0.0
      %933 = vmatpush.msra.mxu0 0.0
      %934 = vmatpush.msra.mxu0 0.0
      %935 = vmatpush.msra.mxu0 0.0
      %936 = vmatpush.msra.mxu0 0.0
      %937 = vmatpush.msra.mxu0 0.0
      %938 = vmatpush.msra.mxu0 0.0
      %939 = vmatpush.msra.mxu0 %v924
      %940 = vmatpush.msra.mxu0 %v923
      %941 = vmatmul.f32.gmra.mxu0 %v338
      %v942 = vpop.f32.mrf.mxu0
      %v943 = vadd.f32 0.0, %v942
      %944 = vmatmul.f32.gmra.mxu0 %v341
      %v945 = vpop.f32.mrf.mxu0
      %v946 = vadd.f32 0.0, %v945
      %947 = vmatmul.f32.gmra.mxu0 %v344
      %v948 = vpop.f32.mrf.mxu0
      %v949 = vadd.f32 0.0, %v948
      %950 = vmatmul.f32.gmra.mxu0 %v347
      %v951 = vpop.f32.mrf.mxu0
      %v952 = vadd.f32 0.0, %v951
      %953 = vdwg.mxu0
      %954 = vst.msk [vmem:[#allocation2 + $0x200] sm:$0xff] %vm336, %v943
      %955 = vst.msk [vmem:[#allocation2 + $0x208] sm:$0xff] %vm336, %v946
      %956 = vst.msk [vmem:[#allocation2 + $0x210] sm:$0xff] %vm336, %v949
      %957 = vst.msk [vmem:[#allocation2 + $0x218] sm:$0xff] %vm336, %v952
      %s958 = scalar_lea.vmem %s299, 272
      %v959 = vld [vmem:[%s958] sm:$0xff]
      %v960 = vld [vmem:[%s958 + $0x8] sm:$0xff]
      %961 = vmatpush.msra.mxu0 0.0
      %962 = vmatpush.msra.mxu0 0.0
      %963 = vmatpush.msra.mxu0 0.0
      %964 = vmatpush.msra.mxu0 0.0
      %965 = vmatpush.msra.mxu0 0.0
      %966 = vmatpush.msra.mxu0 0.0
      %967 = vmatpush.msra.mxu0 0.0
      %968 = vmatpush.msra.mxu0 0.0
      %969 = vmatpush.msra.mxu0 0.0
      %970 = vmatpush.msra.mxu0 0.0
      %971 = vmatpush.msra.mxu0 0.0
      %972 = vmatpush.msra.mxu0 0.0
      %973 = vmatpush.msra.mxu0 0.0
      %974 = vmatpush.msra.mxu0 0.0
      %975 = vmatpush.msra.mxu0 %v960
      %976 = vmatpush.msra.mxu0 %v959
      %977 = vmatmul.f32.gmra.mxu0 %v338
      %v978 = vpop.f32.mrf.mxu0
      %v979 = vadd.f32 0.0, %v978
      %980 = vmatmul.f32.gmra.mxu0 %v341
      %v981 = vpop.f32.mrf.mxu0
      %v982 = vadd.f32 0.0, %v981
      %983 = vmatmul.f32.gmra.mxu0 %v344
      %v984 = vpop.f32.mrf.mxu0
      %v985 = vadd.f32 0.0, %v984
      %986 = vmatmul.f32.gmra.mxu0 %v347
      %v987 = vpop.f32.mrf.mxu0
      %v988 = vadd.f32 0.0, %v987
      %989 = vdwg.mxu0
      %990 = vst.msk [vmem:[#allocation2 + $0x220] sm:$0xff] %vm336, %v979
      %991 = vst.msk [vmem:[#allocation2 + $0x228] sm:$0xff] %vm336, %v982
      %992 = vst.msk [vmem:[#allocation2 + $0x230] sm:$0xff] %vm336, %v985
      %993 = vst.msk [vmem:[#allocation2 + $0x238] sm:$0xff] %vm336, %v988
      %s994 = scalar_lea.vmem %s299, 288
      %v995 = vld [vmem:[%s994] sm:$0xff]
      %v996 = vld [vmem:[%s994 + $0x8] sm:$0xff]
      %997 = vmatpush.msra.mxu0 0.0
      %998 = vmatpush.msra.mxu0 0.0
      %999 = vmatpush.msra.mxu0 0.0
      %1000 = vmatpush.msra.mxu0 0.0
      %1001 = vmatpush.msra.mxu0 0.0
      %1002 = vmatpush.msra.mxu0 0.0
      %1003 = vmatpush.msra.mxu0 0.0
      %1004 = vmatpush.msra.mxu0 0.0
      %1005 = vmatpush.msra.mxu0 0.0
      %1006 = vmatpush.msra.mxu0 0.0
      %1007 = vmatpush.msra.mxu0 0.0
      %1008 = vmatpush.msra.mxu0 0.0
      %1009 = vmatpush.msra.mxu0 0.0
      %1010 = vmatpush.msra.mxu0 0.0
      %1011 = vmatpush.msra.mxu0 %v996
      %1012 = vmatpush.msra.mxu0 %v995
      %1013 = vmatmul.f32.gmra.mxu0 %v338
      %v1014 = vpop.f32.mrf.mxu0
      %v1015 = vadd.f32 0.0, %v1014
      %1016 = vmatmul.f32.gmra.mxu0 %v341
      %v1017 = vpop.f32.mrf.mxu0
      %v1018 = vadd.f32 0.0, %v1017
      %1019 = vmatmul.f32.gmra.mxu0 %v344
      %v1020 = vpop.f32.mrf.mxu0
      %v1021 = vadd.f32 0.0, %v1020
      %1022 = vmatmul.f32.gmra.mxu0 %v347
      %v1023 = vpop.f32.mrf.mxu0
      %v1024 = vadd.f32 0.0, %v1023
      %1025 = vdwg.mxu0
      %1026 = vst.msk [vmem:[#allocation2 + $0x240] sm:$0xff] %vm336, %v1015
      %1027 = vst.msk [vmem:[#allocation2 + $0x248] sm:$0xff] %vm336, %v1018
      %1028 = vst.msk [vmem:[#allocation2 + $0x250] sm:$0xff] %vm336, %v1021
      %1029 = vst.msk [vmem:[#allocation2 + $0x258] sm:$0xff] %vm336, %v1024
      %v1030 = vld [vmem:[#allocation2] sm:$0xff]
      %v1031 = vld [vmem:[#allocation2 + $0x8] sm:$0xff]
      %v1032 = vld [vmem:[#allocation2 + $0x10] sm:$0xff]
      %v1033 = vld [vmem:[#allocation2 + $0x18] sm:$0xff]
      %v1034 = vld [vmem:[#allocation2 + $0x20] sm:$0xff]
      %v1035 = vld [vmem:[#allocation2 + $0x28] sm:$0xff]
      %v1036 = vld [vmem:[#allocation2 + $0x30] sm:$0xff]
      %v1037 = vld [vmem:[#allocation2 + $0x38] sm:$0xff]
      %v1038 = vld [vmem:[#allocation2 + $0x40] sm:$0xff]
      %v1039 = vld [vmem:[#allocation2 + $0x48] sm:$0xff]
      %v1040 = vld [vmem:[#allocation2 + $0x50] sm:$0xff]
      %v1041 = vld [vmem:[#allocation2 + $0x58] sm:$0xff]
      %v1042 = vld [vmem:[#allocation2 + $0x60] sm:$0xff]
      %v1043 = vld [vmem:[#allocation2 + $0x68] sm:$0xff]
      %v1044 = vld [vmem:[#allocation2 + $0x70] sm:$0xff]
      %v1045 = vld [vmem:[#allocation2 + $0x78] sm:$0xff]
      %v1046 = vld [vmem:[#allocation2 + $0x80] sm:$0xff]
      %v1047 = vld [vmem:[#allocation2 + $0x88] sm:$0xff]
      %v1048 = vld [vmem:[#allocation2 + $0x90] sm:$0xff]
      %v1049 = vld [vmem:[#allocation2 + $0x98] sm:$0xff]
      %v1050 = vld [vmem:[#allocation2 + $0xa0] sm:$0xff]
      %v1051 = vld [vmem:[#allocation2 + $0xa8] sm:$0xff]
      %v1052 = vld [vmem:[#allocation2 + $0xb0] sm:$0xff]
      %v1053 = vld [vmem:[#allocation2 + $0xb8] sm:$0xff]
      %v1054 = vld [vmem:[#allocation2 + $0xc0] sm:$0xff]
      %v1055 = vld [vmem:[#allocation2 + $0xc8] sm:$0xff]
      %v1056 = vld [vmem:[#allocation2 + $0xd0] sm:$0xff]
      %v1057 = vld [vmem:[#allocation2 + $0xd8] sm:$0xff]
      %v1058 = vld [vmem:[#allocation2 + $0xe0] sm:$0xff]
      %v1059 = vld [vmem:[#allocation2 + $0xe8] sm:$0xff]
      %v1060 = vld [vmem:[#allocation2 + $0xf0] sm:$0xff]
      %v1061 = vld [vmem:[#allocation2 + $0xf8] sm:$0xff]
      %v1062 = vld [vmem:[#allocation2 + $0x100] sm:$0xff]
      %v1063 = vld [vmem:[#allocation2 + $0x108] sm:$0xff]
      %v1064 = vld [vmem:[#allocation2 + $0x110] sm:$0xff]
      %v1065 = vld [vmem:[#allocation2 + $0x118] sm:$0xff]
      %v1066 = vld [vmem:[#allocation2 + $0x120] sm:$0xff]
      %v1067 = vld [vmem:[#allocation2 + $0x128] sm:$0xff]
      %v1068 = vld [vmem:[#allocation2 + $0x130] sm:$0xff]
      %v1069 = vld [vmem:[#allocation2 + $0x138] sm:$0xff]
      %v1070 = vld [vmem:[#allocation2 + $0x140] sm:$0xff]
      %v1071 = vld [vmem:[#allocation2 + $0x148] sm:$0xff]
      %v1072 = vld [vmem:[#allocation2 + $0x150] sm:$0xff]
      %v1073 = vld [vmem:[#allocation2 + $0x158] sm:$0xff]
      %v1074 = vld [vmem:[#allocation2 + $0x160] sm:$0xff]
      %v1075 = vld [vmem:[#allocation2 + $0x168] sm:$0xff]
      %v1076 = vld [vmem:[#allocation2 + $0x170] sm:$0xff]
      %v1077 = vld [vmem:[#allocation2 + $0x178] sm:$0xff]
      %v1078 = vld [vmem:[#allocation2 + $0x180] sm:$0xff]
      %v1079 = vld [vmem:[#allocation2 + $0x188] sm:$0xff]
      %v1080 = vld [vmem:[#allocation2 + $0x190] sm:$0xff]
      %v1081 = vld [vmem:[#allocation2 + $0x198] sm:$0xff]
      %v1082 = vld [vmem:[#allocation2 + $0x1a0] sm:$0xff]
      %v1083 = vld [vmem:[#allocation2 + $0x1a8] sm:$0xff]
      %v1084 = vld [vmem:[#allocation2 + $0x1b0] sm:$0xff]
      %v1085 = vld [vmem:[#allocation2 + $0x1b8] sm:$0xff]
      %v1086 = vld [vmem:[#allocation2 + $0x1c0] sm:$0xff]
      %v1087 = vld [vmem:[#allocation2 + $0x1c8] sm:$0xff]
      %v1088 = vld [vmem:[#allocation2 + $0x1d0] sm:$0xff]
      %v1089 = vld [vmem:[#allocation2 + $0x1d8] sm:$0xff]
      %v1090 = vld [vmem:[#allocation2 + $0x1e0] sm:$0xff]
      %v1091 = vld [vmem:[#allocation2 + $0x1e8] sm:$0xff]
      %v1092 = vld [vmem:[#allocation2 + $0x1f0] sm:$0xff]
      %v1093 = vld [vmem:[#allocation2 + $0x1f8] sm:$0xff]
      %v1094 = vld [vmem:[#allocation2 + $0x200] sm:$0xff]
      %v1095 = vld [vmem:[#allocation2 + $0x208] sm:$0xff]
      %v1096 = vld [vmem:[#allocation2 + $0x210] sm:$0xff]
      %v1097 = vld [vmem:[#allocation2 + $0x218] sm:$0xff]
      %v1098 = vld [vmem:[#allocation2 + $0x220] sm:$0xff]
      %v1099 = vld [vmem:[#allocation2 + $0x228] sm:$0xff]
      %v1100 = vld [vmem:[#allocation2 + $0x230] sm:$0xff]
      %v1101 = vld [vmem:[#allocation2 + $0x238] sm:$0xff]
      %v1102 = vld [vmem:[#allocation2 + $0x240] sm:$0xff]
      %v1103 = vld [vmem:[#allocation2 + $0x248] sm:$0xff]
      %v1104 = vld [vmem:[#allocation2 + $0x250] sm:$0xff]
      %v1105 = vld [vmem:[#allocation2 + $0x258] sm:$0xff]
      %v1106 = vld [vmem:[%s1] sm:$0xff]
      %v1107 = vld [vmem:[%s1 + $0x8] sm:$0xff]
      %v1109 = vsel %vm336, %v1030, 0
      %v1112 = vsel %vm336, %v1031, 0
      %v1115 = vsel %vm336, %v1032, 0
      %v1118 = vsel %vm336, %v1033, 0
      %v1121 = vsel %vm336, %v1034, 0
      %v1124 = vsel %vm336, %v1035, 0
      %v1127 = vsel %vm336, %v1036, 0
      %v1130 = vsel %vm336, %v1037, 0
      %v1133 = vsel %vm336, %v1038, 0
      %v1136 = vsel %vm336, %v1039, 0
      %v1139 = vsel %vm336, %v1040, 0
      %v1142 = vsel %vm336, %v1041, 0
      %v1145 = vsel %vm336, %v1042, 0
      %v1148 = vsel %vm336, %v1043, 0
      %v1151 = vsel %vm336, %v1044, 0
      %v1154 = vsel %vm336, %v1045, 0
      %v1157 = vsel %vm336, %v1046, 0
      %v1160 = vsel %vm336, %v1047, 0
      %v1163 = vsel %vm336, %v1048, 0
      %v1166 = vsel %vm336, %v1049, 0
      %v1169 = vsel %vm336, %v1050, 0
      %v1172 = vsel %vm336, %v1051, 0
      %v1175 = vsel %vm336, %v1052, 0
      %v1178 = vsel %vm336, %v1053, 0
      %v1181 = vsel %vm336, %v1054, 0
      %v1184 = vsel %vm336, %v1055, 0
      %v1187 = vsel %vm336, %v1056, 0
      %v1190 = vsel %vm336, %v1057, 0
      %v1193 = vsel %vm336, %v1058, 0
      %v1196 = vsel %vm336, %v1059, 0
      %v1199 = vsel %vm336, %v1060, 0
      %v1202 = vsel %vm336, %v1061, 0
      %v1205 = vsel %vm336, %v1062, 0
      %v1208 = vsel %vm336, %v1063, 0
      %v1211 = vsel %vm336, %v1064, 0
      %v1214 = vsel %vm336, %v1065, 0
      %v1217 = vsel %vm336, %v1066, 0
      %v1220 = vsel %vm336, %v1067, 0
      %v1223 = vsel %vm336, %v1068, 0
      %v1226 = vsel %vm336, %v1069, 0
      %v1229 = vsel %vm336, %v1070, 0
      %v1232 = vsel %vm336, %v1071, 0
      %v1235 = vsel %vm336, %v1072, 0
      %v1238 = vsel %vm336, %v1073, 0
      %v1241 = vsel %vm336, %v1074, 0
      %v1244 = vsel %vm336, %v1075, 0
      %v1247 = vsel %vm336, %v1076, 0
      %v1250 = vsel %vm336, %v1077, 0
      %v1253 = vsel %vm336, %v1078, 0
      %v1256 = vsel %vm336, %v1079, 0
      %v1259 = vsel %vm336, %v1080, 0
      %v1262 = vsel %vm336, %v1081, 0
      %v1265 = vsel %vm336, %v1082, 0
      %v1268 = vsel %vm336, %v1083, 0
      %v1271 = vsel %vm336, %v1084, 0
      %v1274 = vsel %vm336, %v1085, 0
      %v1277 = vsel %vm336, %v1086, 0
      %v1280 = vsel %vm336, %v1087, 0
      %v1283 = vsel %vm336, %v1088, 0
      %v1286 = vsel %vm336, %v1089, 0
      %v1289 = vsel %vm336, %v1090, 0
      %v1292 = vsel %vm336, %v1091, 0
      %v1295 = vsel %vm336, %v1092, 0
      %v1298 = vsel %vm336, %v1093, 0
      %v1301 = vsel %vm336, %v1094, 0
      %v1304 = vsel %vm336, %v1095, 0
      %v1307 = vsel %vm336, %v1096, 0
      %v1310 = vsel %vm336, %v1097, 0
      %v1313 = vsel %vm336, %v1098, 0
      %v1316 = vsel %vm336, %v1099, 0
      %v1319 = vsel %vm336, %v1100, 0
      %v1322 = vsel %vm336, %v1101, 0
      %v1325 = vsel %vm336, %v1102, 0
      %v1328 = vsel %vm336, %v1103, 0
      %v1331 = vsel %vm336, %v1104, 0
      %v1334 = vsel %vm336, %v1105, 0
      %1336 = vmatpush.msra.mxu0 0.0
      %1337 = vmatpush.msra.mxu0 0.0
      %1338 = vmatpush.msra.mxu0 0.0
      %1339 = vmatpush.msra.mxu0 0.0
      %1340 = vmatpush.msra.mxu0 0.0
      %1341 = vmatpush.msra.mxu0 0.0
      %1342 = vmatpush.msra.mxu0 0.0
      %1343 = vmatpush.msra.mxu0 0.0
      %1344 = vmatpush.msra.mxu0 0.0
      %1345 = vmatpush.msra.mxu0 0.0
      %1346 = vmatpush.msra.mxu0 0.0
      %1347 = vmatpush.msra.mxu0 0.0
      %1348 = vmatpush.msra.mxu0 0.0
      %1349 = vmatpush.msra.mxu0 0.0
      %1350 = vmatpush.msra.mxu0 %v1107
      %1351 = vmatpush.msra.mxu0 %v1106
      %1352 = vmatmul.f32.gmra.mxu0 %v1109
      %v1353 = vpop.f32.mrf.mxu0
      %v1354 = vadd.f32 0.0, %v1353
      %1355 = vmatmul.f32.gmra.mxu0 %v1112
      %v1356 = vpop.f32.mrf.mxu0
      %v1357 = vadd.f32 0.0, %v1356
      %1358 = vmatmul.f32.gmra.mxu0 %v1115
      %v1359 = vpop.f32.mrf.mxu0
      %v1360 = vadd.f32 0.0, %v1359
      %1361 = vmatmul.f32.gmra.mxu0 %v1118
      %v1362 = vpop.f32.mrf.mxu0
      %v1363 = vadd.f32 0.0, %v1362
      %1364 = vmatmul.f32.gmra.mxu0 %v1121
      %v1365 = vpop.f32.mrf.mxu0
      %v1366 = vadd.f32 0.0, %v1365
      %1367 = vmatmul.f32.gmra.mxu0 %v1124
      %v1368 = vpop.f32.mrf.mxu0
      %v1369 = vadd.f32 0.0, %v1368
      %1370 = vmatmul.f32.gmra.mxu0 %v1127
      %v1371 = vpop.f32.mrf.mxu0
      %v1372 = vadd.f32 0.0, %v1371
      %1373 = vmatmul.f32.gmra.mxu0 %v1130
      %v1374 = vpop.f32.mrf.mxu0
      %v1375 = vadd.f32 0.0, %v1374
      %1376 = vmatmul.f32.gmra.mxu0 %v1133
      %v1377 = vpop.f32.mrf.mxu0
      %v1378 = vadd.f32 0.0, %v1377
      %1379 = vmatmul.f32.gmra.mxu0 %v1136
      %v1380 = vpop.f32.mrf.mxu0
      %v1381 = vadd.f32 0.0, %v1380
      %1382 = vmatmul.f32.gmra.mxu0 %v1139
      %v1383 = vpop.f32.mrf.mxu0
      %v1384 = vadd.f32 0.0, %v1383
      %1385 = vmatmul.f32.gmra.mxu0 %v1142
      %v1386 = vpop.f32.mrf.mxu0
      %v1387 = vadd.f32 0.0, %v1386
      %1388 = vmatmul.f32.gmra.mxu0 %v1145
      %v1389 = vpop.f32.mrf.mxu0
      %v1390 = vadd.f32 0.0, %v1389
      %1391 = vmatmul.f32.gmra.mxu0 %v1148
      %v1392 = vpop.f32.mrf.mxu0
      %v1393 = vadd.f32 0.0, %v1392
      %1394 = vmatmul.f32.gmra.mxu0 %v1151
      %v1395 = vpop.f32.mrf.mxu0
      %v1396 = vadd.f32 0.0, %v1395
      %1397 = vmatmul.f32.gmra.mxu0 %v1154
      %v1398 = vpop.f32.mrf.mxu0
      %v1399 = vadd.f32 0.0, %v1398
      %1400 = vmatmul.f32.gmra.mxu0 %v1157
      %v1401 = vpop.f32.mrf.mxu0
      %v1402 = vadd.f32 0.0, %v1401
      %1403 = vmatmul.f32.gmra.mxu0 %v1160
      %v1404 = vpop.f32.mrf.mxu0
      %v1405 = vadd.f32 0.0, %v1404
      %1406 = vmatmul.f32.gmra.mxu0 %v1163
      %v1407 = vpop.f32.mrf.mxu0
      %v1408 = vadd.f32 0.0, %v1407
      %1409 = vmatmul.f32.gmra.mxu0 %v1166
      %v1410 = vpop.f32.mrf.mxu0
      %v1411 = vadd.f32 0.0, %v1410
      %1412 = vmatmul.f32.gmra.mxu0 %v1169
      %v1413 = vpop.f32.mrf.mxu0
      %v1414 = vadd.f32 0.0, %v1413
      %1415 = vmatmul.f32.gmra.mxu0 %v1172
      %v1416 = vpop.f32.mrf.mxu0
      %v1417 = vadd.f32 0.0, %v1416
      %1418 = vmatmul.f32.gmra.mxu0 %v1175
      %v1419 = vpop.f32.mrf.mxu0
      %v1420 = vadd.f32 0.0, %v1419
      %1421 = vmatmul.f32.gmra.mxu0 %v1178
      %v1422 = vpop.f32.mrf.mxu0
      %v1423 = vadd.f32 0.0, %v1422
      %1424 = vmatmul.f32.gmra.mxu0 %v1181
      %v1425 = vpop.f32.mrf.mxu0
      %v1426 = vadd.f32 0.0, %v1425
      %1427 = vmatmul.f32.gmra.mxu0 %v1184
      %v1428 = vpop.f32.mrf.mxu0
      %v1429 = vadd.f32 0.0, %v1428
      %1430 = vmatmul.f32.gmra.mxu0 %v1187
      %v1431 = vpop.f32.mrf.mxu0
      %v1432 = vadd.f32 0.0, %v1431
      %1433 = vmatmul.f32.gmra.mxu0 %v1190
      %v1434 = vpop.f32.mrf.mxu0
      %v1435 = vadd.f32 0.0, %v1434
      %1436 = vmatmul.f32.gmra.mxu0 %v1193
      %v1437 = vpop.f32.mrf.mxu0
      %v1438 = vadd.f32 0.0, %v1437
      %1439 = vmatmul.f32.gmra.mxu0 %v1196
      %v1440 = vpop.f32.mrf.mxu0
      %v1441 = vadd.f32 0.0, %v1440
      %1442 = vmatmul.f32.gmra.mxu0 %v1199
      %v1443 = vpop.f32.mrf.mxu0
      %v1444 = vadd.f32 0.0, %v1443
      %1445 = vmatmul.f32.gmra.mxu0 %v1202
      %v1446 = vpop.f32.mrf.mxu0
      %v1447 = vadd.f32 0.0, %v1446
      %1448 = vmatmul.f32.gmra.mxu0 %v1205
      %v1449 = vpop.f32.mrf.mxu0
      %v1450 = vadd.f32 0.0, %v1449
      %1451 = vmatmul.f32.gmra.mxu0 %v1208
      %v1452 = vpop.f32.mrf.mxu0
      %v1453 = vadd.f32 0.0, %v1452
      %1454 = vmatmul.f32.gmra.mxu0 %v1211
      %v1455 = vpop.f32.mrf.mxu0
      %v1456 = vadd.f32 0.0, %v1455
      %1457 = vmatmul.f32.gmra.mxu0 %v1214
      %v1458 = vpop.f32.mrf.mxu0
      %v1459 = vadd.f32 0.0, %v1458
      %1460 = vmatmul.f32.gmra.mxu0 %v1217
      %v1461 = vpop.f32.mrf.mxu0
      %v1462 = vadd.f32 0.0, %v1461
      %1463 = vmatmul.f32.gmra.mxu0 %v1220
      %v1464 = vpop.f32.mrf.mxu0
      %v1465 = vadd.f32 0.0, %v1464
      %1466 = vmatmul.f32.gmra.mxu0 %v1223
      %v1467 = vpop.f32.mrf.mxu0
      %v1468 = vadd.f32 0.0, %v1467
      %1469 = vmatmul.f32.gmra.mxu0 %v1226
      %v1470 = vpop.f32.mrf.mxu0
      %v1471 = vadd.f32 0.0, %v1470
      %1472 = vmatmul.f32.gmra.mxu0 %v1229
      %v1473 = vpop.f32.mrf.mxu0
      %v1474 = vadd.f32 0.0, %v1473
      %1475 = vmatmul.f32.gmra.mxu0 %v1232
      %v1476 = vpop.f32.mrf.mxu0
      %v1477 = vadd.f32 0.0, %v1476
      %1478 = vmatmul.f32.gmra.mxu0 %v1235
      %v1479 = vpop.f32.mrf.mxu0
      %v1480 = vadd.f32 0.0, %v1479
      %1481 = vmatmul.f32.gmra.mxu0 %v1238
      %v1482 = vpop.f32.mrf.mxu0
      %v1483 = vadd.f32 0.0, %v1482
      %1484 = vmatmul.f32.gmra.mxu0 %v1241
      %v1485 = vpop.f32.mrf.mxu0
      %v1486 = vadd.f32 0.0, %v1485
      %1487 = vmatmul.f32.gmra.mxu0 %v1244
      %v1488 = vpop.f32.mrf.mxu0
      %v1489 = vadd.f32 0.0, %v1488
      %1490 = vmatmul.f32.gmra.mxu0 %v1247
      %v1491 = vpop.f32.mrf.mxu0
      %v1492 = vadd.f32 0.0, %v1491
      %1493 = vmatmul.f32.gmra.mxu0 %v1250
      %v1494 = vpop.f32.mrf.mxu0
      %v1495 = vadd.f32 0.0, %v1494
      %1496 = vmatmul.f32.gmra.mxu0 %v1253
      %v1497 = vpop.f32.mrf.mxu0
      %v1498 = vadd.f32 0.0, %v1497
      %1499 = vmatmul.f32.gmra.mxu0 %v1256
      %v1500 = vpop.f32.mrf.mxu0
      %v1501 = vadd.f32 0.0, %v1500
      %1502 = vmatmul.f32.gmra.mxu0 %v1259
      %v1503 = vpop.f32.mrf.mxu0
      %v1504 = vadd.f32 0.0, %v1503
      %1505 = vmatmul.f32.gmra.mxu0 %v1262
      %v1506 = vpop.f32.mrf.mxu0
      %v1507 = vadd.f32 0.0, %v1506
      %1508 = vmatmul.f32.gmra.mxu0 %v1265
      %v1509 = vpop.f32.mrf.mxu0
      %v1510 = vadd.f32 0.0, %v1509
      %1511 = vmatmul.f32.gmra.mxu0 %v1268
      %v1512 = vpop.f32.mrf.mxu0
      %v1513 = vadd.f32 0.0, %v1512
      %1514 = vmatmul.f32.gmra.mxu0 %v1271
      %v1515 = vpop.f32.mrf.mxu0
      %v1516 = vadd.f32 0.0, %v1515
      %1517 = vmatmul.f32.gmra.mxu0 %v1274
      %v1518 = vpop.f32.mrf.mxu0
      %v1519 = vadd.f32 0.0, %v1518
      %1520 = vmatmul.f32.gmra.mxu0 %v1277
      %v1521 = vpop.f32.mrf.mxu0
      %v1522 = vadd.f32 0.0, %v1521
      %1523 = vmatmul.f32.gmra.mxu0 %v1280
      %v1524 = vpop.f32.mrf.mxu0
      %v1525 = vadd.f32 0.0, %v1524
      %1526 = vmatmul.f32.gmra.mxu0 %v1283
      %v1527 = vpop.f32.mrf.mxu0
      %v1528 = vadd.f32 0.0, %v1527
      %1529 = vmatmul.f32.gmra.mxu0 %v1286
      %v1530 = vpop.f32.mrf.mxu0
      %v1531 = vadd.f32 0.0, %v1530
      %1532 = vmatmul.f32.gmra.mxu0 %v1289
      %v1533 = vpop.f32.mrf.mxu0
      %v1534 = vadd.f32 0.0, %v1533
      %1535 = vmatmul.f32.gmra.mxu0 %v1292
      %v1536 = vpop.f32.mrf.mxu0
      %v1537 = vadd.f32 0.0, %v1536
      %1538 = vmatmul.f32.gmra.mxu0 %v1295
      %v1539 = vpop.f32.mrf.mxu0
      %v1540 = vadd.f32 0.0, %v1539
      %1541 = vmatmul.f32.gmra.mxu0 %v1298
      %v1542 = vpop.f32.mrf.mxu0
      %v1543 = vadd.f32 0.0, %v1542
      %1544 = vmatmul.f32.gmra.mxu0 %v1301
      %v1545 = vpop.f32.mrf.mxu0
      %v1546 = vadd.f32 0.0, %v1545
      %1547 = vmatmul.f32.gmra.mxu0 %v1304
      %v1548 = vpop.f32.mrf.mxu0
      %v1549 = vadd.f32 0.0, %v1548
      %1550 = vmatmul.f32.gmra.mxu0 %v1307
      %v1551 = vpop.f32.mrf.mxu0
      %v1552 = vadd.f32 0.0, %v1551
      %1553 = vmatmul.f32.gmra.mxu0 %v1310
      %v1554 = vpop.f32.mrf.mxu0
      %v1555 = vadd.f32 0.0, %v1554
      %1556 = vmatmul.f32.gmra.mxu0 %v1313
      %v1557 = vpop.f32.mrf.mxu0
      %v1558 = vadd.f32 0.0, %v1557
      %1559 = vmatmul.f32.gmra.mxu0 %v1316
      %v1560 = vpop.f32.mrf.mxu0
      %v1561 = vadd.f32 0.0, %v1560
      %1562 = vmatmul.f32.gmra.mxu0 %v1319
      %v1563 = vpop.f32.mrf.mxu0
      %v1564 = vadd.f32 0.0, %v1563
      %1565 = vmatmul.f32.gmra.mxu0 %v1322
      %v1566 = vpop.f32.mrf.mxu0
      %v1567 = vadd.f32 0.0, %v1566
      %1568 = vmatmul.f32.gmra.mxu0 %v1325
      %v1569 = vpop.f32.mrf.mxu0
      %v1570 = vadd.f32 0.0, %v1569
      %1571 = vmatmul.f32.gmra.mxu0 %v1328
      %v1572 = vpop.f32.mrf.mxu0
      %v1573 = vadd.f32 0.0, %v1572
      %1574 = vmatmul.f32.gmra.mxu0 %v1331
      %v1575 = vpop.f32.mrf.mxu0
      %v1576 = vadd.f32 0.0, %v1575
      %1577 = vmatmul.f32.gmra.mxu0 %v1334
      %v1578 = vpop.f32.mrf.mxu0
      %v1579 = vadd.f32 0.0, %v1578
      %1580 = vdwg.mxu0
      %vm1581 = vcmask 261120
      %v1582 = vsel %vm1581, %v1354, -inf
      %v1583 = vsel %vm1581, %v1366, -inf
      %v1584 = vmax.f32 %v1582, %v1583
      %v1585 = vsel %vm1581, %v1378, -inf
      %v1586 = vmax.f32 %v1584, %v1585
      %v1587 = vsel %vm1581, %v1390, -inf
      %v1588 = vmax.f32 %v1586, %v1587
      %v1589 = vsel %vm1581, %v1402, -inf
      %v1590 = vmax.f32 %v1588, %v1589
      %v1591 = vsel %vm1581, %v1414, -inf
      %v1592 = vmax.f32 %v1590, %v1591
      %v1593 = vsel %vm1581, %v1426, -inf
      %v1594 = vmax.f32 %v1592, %v1593
      %v1595 = vsel %vm1581, %v1438, -inf
      %v1596 = vmax.f32 %v1594, %v1595
      %v1597 = vsel %vm1581, %v1450, -inf
      %v1598 = vmax.f32 %v1596, %v1597
      %v1599 = vsel %vm1581, %v1462, -inf
      %v1600 = vmax.f32 %v1598, %v1599
      %v1601 = vsel %vm1581, %v1474, -inf
      %v1602 = vmax.f32 %v1600, %v1601
      %v1603 = vsel %vm1581, %v1486, -inf
      %v1604 = vmax.f32 %v1602, %v1603
      %v1605 = vsel %vm1581, %v1498, -inf
      %v1606 = vmax.f32 %v1604, %v1605
      %v1607 = vsel %vm1581, %v1510, -inf
      %v1608 = vmax.f32 %v1606, %v1607
      %v1609 = vsel %vm1581, %v1522, -inf
      %v1610 = vmax.f32 %v1608, %v1609
      %v1611 = vsel %vm1581, %v1534, -inf
      %v1612 = vmax.f32 %v1610, %v1611
      %v1613 = vsel %vm1581, %v1546, -inf
      %v1614 = vmax.f32 %v1612, %v1613
      %v1615 = vsel %vm1581, %v1558, -inf
      %v1616 = vmax.f32 %v1614, %v1615
      %v1617 = vsel %vm1581, %v1570, -inf
      %v1618 = vmax.f32 %v1616, %v1617
      %v1619 = vsel %vm1581, %v1357, -inf
      %v1620 = vsel %vm1581, %v1369, -inf
      %v1621 = vmax.f32 %v1619, %v1620
      %v1622 = vsel %vm1581, %v1381, -inf
      %v1623 = vmax.f32 %v1621, %v1622
      %v1624 = vsel %vm1581, %v1393, -inf
      %v1625 = vmax.f32 %v1623, %v1624
      %v1626 = vsel %vm1581, %v1405, -inf
      %v1627 = vmax.f32 %v1625, %v1626
      %v1628 = vsel %vm1581, %v1417, -inf
      %v1629 = vmax.f32 %v1627, %v1628
      %v1630 = vsel %vm1581, %v1429, -inf
      %v1631 = vmax.f32 %v1629, %v1630
      %v1632 = vsel %vm1581, %v1441, -inf
      %v1633 = vmax.f32 %v1631, %v1632
      %v1634 = vsel %vm1581, %v1453, -inf
      %v1635 = vmax.f32 %v1633, %v1634
      %v1636 = vsel %vm1581, %v1465, -inf
      %v1637 = vmax.f32 %v1635, %v1636
      %v1638 = vsel %vm1581, %v1477, -inf
      %v1639 = vmax.f32 %v1637, %v1638
      %v1640 = vsel %vm1581, %v1489, -inf
      %v1641 = vmax.f32 %v1639, %v1640
      %v1642 = vsel %vm1581, %v1501, -inf
      %v1643 = vmax.f32 %v1641, %v1642
      %v1644 = vsel %vm1581, %v1513, -inf
      %v1645 = vmax.f32 %v1643, %v1644
      %v1646 = vsel %vm1581, %v1525, -inf
      %v1647 = vmax.f32 %v1645, %v1646
      %v1648 = vsel %vm1581, %v1537, -inf
      %v1649 = vmax.f32 %v1647, %v1648
      %v1650 = vsel %vm1581, %v1549, -inf
      %v1651 = vmax.f32 %v1649, %v1650
      %v1652 = vsel %vm1581, %v1561, -inf
      %v1653 = vmax.f32 %v1651, %v1652
      %v1654 = vsel %vm1581, %v1573, -inf
      %v1655 = vmax.f32 %v1653, %v1654
      %v1656 = vsel %vm1581, %v1360, -inf
      %v1657 = vsel %vm1581, %v1372, -inf
      %v1658 = vmax.f32 %v1656, %v1657
      %v1659 = vsel %vm1581, %v1384, -inf
      %v1660 = vmax.f32 %v1658, %v1659
      %v1661 = vsel %vm1581, %v1396, -inf
      %v1662 = vmax.f32 %v1660, %v1661
      %v1663 = vsel %vm1581, %v1408, -inf
      %v1664 = vmax.f32 %v1662, %v1663
      %v1665 = vsel %vm1581, %v1420, -inf
      %v1666 = vmax.f32 %v1664, %v1665
      %v1667 = vsel %vm1581, %v1432, -inf
      %v1668 = vmax.f32 %v1666, %v1667
      %v1669 = vsel %vm1581, %v1444, -inf
      %v1670 = vmax.f32 %v1668, %v1669
      %v1671 = vsel %vm1581, %v1456, -inf
      %v1672 = vmax.f32 %v1670, %v1671
      %v1673 = vsel %vm1581, %v1468, -inf
      %v1674 = vmax.f32 %v1672, %v1673
      %v1675 = vsel %vm1581, %v1480, -inf
      %v1676 = vmax.f32 %v1674, %v1675
      %v1677 = vsel %vm1581, %v1492, -inf
      %v1678 = vmax.f32 %v1676, %v1677
      %v1679 = vsel %vm1581, %v1504, -inf
      %v1680 = vmax.f32 %v1678, %v1679
      %v1681 = vsel %vm1581, %v1516, -inf
      %v1682 = vmax.f32 %v1680, %v1681
      %v1683 = vsel %vm1581, %v1528, -inf
      %v1684 = vmax.f32 %v1682, %v1683
      %v1685 = vsel %vm1581, %v1540, -inf
      %v1686 = vmax.f32 %v1684, %v1685
      %v1687 = vsel %vm1581, %v1552, -inf
      %v1688 = vmax.f32 %v1686, %v1687
      %v1689 = vsel %vm1581, %v1564, -inf
      %v1690 = vmax.f32 %v1688, %v1689
      %v1691 = vsel %vm1581, %v1576, -inf
      %v1692 = vmax.f32 %v1690, %v1691
      %v1693 = vsel %vm1581, %v1363, -inf
      %v1694 = vsel %vm1581, %v1375, -inf
      %v1695 = vmax.f32 %v1693, %v1694
      %v1696 = vsel %vm1581, %v1387, -inf
      %v1697 = vmax.f32 %v1695, %v1696
      %v1698 = vsel %vm1581, %v1399, -inf
      %v1699 = vmax.f32 %v1697, %v1698
      %v1700 = vsel %vm1581, %v1411, -inf
      %v1701 = vmax.f32 %v1699, %v1700
      %v1702 = vsel %vm1581, %v1423, -inf
      %v1703 = vmax.f32 %v1701, %v1702
      %v1704 = vsel %vm1581, %v1435, -inf
      %v1705 = vmax.f32 %v1703, %v1704
      %v1706 = vsel %vm1581, %v1447, -inf
      %v1707 = vmax.f32 %v1705, %v1706
      %v1708 = vsel %vm1581, %v1459, -inf
      %v1709 = vmax.f32 %v1707, %v1708
      %v1710 = vsel %vm1581, %v1471, -inf
      %v1711 = vmax.f32 %v1709, %v1710
      %v1712 = vsel %vm1581, %v1483, -inf
      %v1713 = vmax.f32 %v1711, %v1712
      %v1714 = vsel %vm1581, %v1495, -inf
      %v1715 = vmax.f32 %v1713, %v1714
      %v1716 = vsel %vm1581, %v1507, -inf
      %v1717 = vmax.f32 %v1715, %v1716
      %v1718 = vsel %vm1581, %v1519, -inf
      %v1719 = vmax.f32 %v1717, %v1718
      %v1720 = vsel %vm1581, %v1531, -inf
      %v1721 = vmax.f32 %v1719, %v1720
      %v1722 = vsel %vm1581, %v1543, -inf
      %v1723 = vmax.f32 %v1721, %v1722
      %v1724 = vsel %vm1581, %v1555, -inf
      %v1725 = vmax.f32 %v1723, %v1724
      %v1726 = vsel %vm1581, %v1567, -inf
      %v1727 = vmax.f32 %v1725, %v1726
      %v1728 = vsel %vm1581, %v1579, -inf
      %v1729 = vmax.f32 %v1727, %v1728
      %v1730 = vsub.f32 %v1354, %v1618
      %v1731 = vsub.f32 %v1357, %v1655
      %v1732 = vsub.f32 %v1360, %v1692
      %v1733 = vsub.f32 %v1363, %v1729
      %v1734 = vsub.f32 %v1366, %v1618
      %v1735 = vsub.f32 %v1369, %v1655
      %v1736 = vsub.f32 %v1372, %v1692
      %v1737 = vsub.f32 %v1375, %v1729
      %v1738 = vsub.f32 %v1378, %v1618
      %v1739 = vsub.f32 %v1381, %v1655
      %v1740 = vsub.f32 %v1384, %v1692
      %v1741 = vsub.f32 %v1387, %v1729
      %v1742 = vsub.f32 %v1390, %v1618
      %v1743 = vsub.f32 %v1393, %v1655
      %v1744 = vsub.f32 %v1396, %v1692
      %v1745 = vsub.f32 %v1399, %v1729
      %v1746 = vsub.f32 %v1402, %v1618
      %v1747 = vsub.f32 %v1405, %v1655
      %v1748 = vsub.f32 %v1408, %v1692
      %v1749 = vsub.f32 %v1411, %v1729
      %v1750 = vsub.f32 %v1414, %v1618
      %v1751 = vsub.f32 %v1417, %v1655
      %v1752 = vsub.f32 %v1420, %v1692
      %v1753 = vsub.f32 %v1423, %v1729
      %v1754 = vsub.f32 %v1426, %v1618
      %v1755 = vsub.f32 %v1429, %v1655
      %v1756 = vsub.f32 %v1432, %v1692
      %v1757 = vsub.f32 %v1435, %v1729
      %v1758 = vsub.f32 %v1438, %v1618
      %v1759 = vsub.f32 %v1441, %v1655
      %v1760 = vsub.f32 %v1444, %v1692
      %v1761 = vsub.f32 %v1447, %v1729
      %v1762 = vsub.f32 %v1450, %v1618
      %v1763 = vsub.f32 %v1453, %v1655
      %v1764 = vsub.f32 %v1456, %v1692
      %v1765 = vsub.f32 %v1459, %v1729
      %v1766 = vsub.f32 %v1462, %v1618
      %v1767 = vsub.f32 %v1465, %v1655
      %v1768 = vsub.f32 %v1468, %v1692
      %v1769 = vsub.f32 %v1471, %v1729
      %v1770 = vsub.f32 %v1474, %v1618
      %v1771 = vsub.f32 %v1477, %v1655
      %v1772 = vsub.f32 %v1480, %v1692
      %v1773 = vsub.f32 %v1483, %v1729
      %v1774 = vsub.f32 %v1486, %v1618
      %v1775 = vsub.f32 %v1489, %v1655
      %v1776 = vsub.f32 %v1492, %v1692
      %v1777 = vsub.f32 %v1495, %v1729
      %v1778 = vsub.f32 %v1498, %v1618
      %v1779 = vsub.f32 %v1501, %v1655
      %v1780 = vsub.f32 %v1504, %v1692
      %v1781 = vsub.f32 %v1507, %v1729
      %v1782 = vsub.f32 %v1510, %v1618
      %v1783 = vsub.f32 %v1513, %v1655
      %v1784 = vsub.f32 %v1516, %v1692
      %v1785 = vsub.f32 %v1519, %v1729
      %v1786 = vsub.f32 %v1522, %v1618
      %v1787 = vsub.f32 %v1525, %v1655
      %v1788 = vsub.f32 %v1528, %v1692
      %v1789 = vsub.f32 %v1531, %v1729
      %v1790 = vsub.f32 %v1534, %v1618
      %v1791 = vsub.f32 %v1537, %v1655
      %v1792 = vsub.f32 %v1540, %v1692
      %v1793 = vsub.f32 %v1543, %v1729
      %v1794 = vsub.f32 %v1546, %v1618
      %v1795 = vsub.f32 %v1549, %v1655
      %v1796 = vsub.f32 %v1552, %v1692
      %v1797 = vsub.f32 %v1555, %v1729
      %v1798 = vsub.f32 %v1558, %v1618
      %v1799 = vsub.f32 %v1561, %v1655
      %v1800 = vsub.f32 %v1564, %v1692
      %v1801 = vsub.f32 %v1567, %v1729
      %v1802 = vsub.f32 %v1570, %v1618
      %v1803 = vsub.f32 %v1573, %v1655
      %v1804 = vsub.f32 %v1576, %v1692
      %v1805 = vsub.f32 %v1579, %v1729
      %v1806 = vmul.f32 %v1730, 1.442695
      %v1807 = vpow.pop %v1806
      %v1808 = vmul.f32 %v1731, 1.442695
      %v1809 = vpow.pop %v1808
      %v1810 = vmul.f32 %v1732, 1.442695
      %v1811 = vpow.pop %v1810
      %v1812 = vmul.f32 %v1733, 1.442695
      %v1813 = vpow.pop %v1812
      %v1814 = vmul.f32 %v1734, 1.442695
      %v1815 = vpow.pop %v1814
      %v1816 = vmul.f32 %v1735, 1.442695
      %v1817 = vpow.pop %v1816
      %v1818 = vmul.f32 %v1736, 1.442695
      %v1819 = vpow.pop %v1818
      %v1820 = vmul.f32 %v1737, 1.442695
      %v1821 = vpow.pop %v1820
      %v1822 = vmul.f32 %v1738, 1.442695
      %v1823 = vpow.pop %v1822
      %v1824 = vmul.f32 %v1739, 1.442695
      %v1825 = vpow.pop %v1824
      %v1826 = vmul.f32 %v1740, 1.442695
      %v1827 = vpow.pop %v1826
      %v1828 = vmul.f32 %v1741, 1.442695
      %v1829 = vpow.pop %v1828
      %v1830 = vmul.f32 %v1742, 1.442695
      %v1831 = vpow.pop %v1830
      %v1832 = vmul.f32 %v1743, 1.442695
      %v1833 = vpow.pop %v1832
      %v1834 = vmul.f32 %v1744, 1.442695
      %v1835 = vpow.pop %v1834
      %v1836 = vmul.f32 %v1745, 1.442695
      %v1837 = vpow.pop %v1836
      %v1838 = vmul.f32 %v1746, 1.442695
      %v1839 = vpow.pop %v1838
      %v1840 = vmul.f32 %v1747, 1.442695
      %v1841 = vpow.pop %v1840
      %v1842 = vmul.f32 %v1748, 1.442695
      %v1843 = vpow.pop %v1842
      %v1844 = vmul.f32 %v1749, 1.442695
      %v1845 = vpow.pop %v1844
      %v1846 = vmul.f32 %v1750, 1.442695
      %v1847 = vpow.pop %v1846
      %v1848 = vmul.f32 %v1751, 1.442695
      %v1849 = vpow.pop %v1848
      %v1850 = vmul.f32 %v1752, 1.442695
      %v1851 = vpow.pop %v1850
      %v1852 = vmul.f32 %v1753, 1.442695
      %v1853 = vpow.pop %v1852
      %v1854 = vmul.f32 %v1754, 1.442695
      %v1855 = vpow.pop %v1854
      %v1856 = vmul.f32 %v1755, 1.442695
      %v1857 = vpow.pop %v1856
      %v1858 = vmul.f32 %v1756, 1.442695
      %v1859 = vpow.pop %v1858
      %v1860 = vmul.f32 %v1757, 1.442695
      %v1861 = vpow.pop %v1860
      %v1862 = vmul.f32 %v1758, 1.442695
      %v1863 = vpow.pop %v1862
      %v1864 = vmul.f32 %v1759, 1.442695
      %v1865 = vpow.pop %v1864
      %v1866 = vmul.f32 %v1760, 1.442695
      %v1867 = vpow.pop %v1866
      %v1868 = vmul.f32 %v1761, 1.442695
      %v1869 = vpow.pop %v1868
      %v1870 = vmul.f32 %v1762, 1.442695
      %v1871 = vpow.pop %v1870
      %v1872 = vmul.f32 %v1763, 1.442695
      %v1873 = vpow.pop %v1872
      %v1874 = vmul.f32 %v1764, 1.442695
      %v1875 = vpow.pop %v1874
      %v1876 = vmul.f32 %v1765, 1.442695
      %v1877 = vpow.pop %v1876
      %v1878 = vmul.f32 %v1766, 1.442695
      %v1879 = vpow.pop %v1878
      %v1880 = vmul.f32 %v1767, 1.442695
      %v1881 = vpow.pop %v1880
      %v1882 = vmul.f32 %v1768, 1.442695
      %v1883 = vpow.pop %v1882
      %v1884 = vmul.f32 %v1769, 1.442695
      %v1885 = vpow.pop %v1884
      %v1886 = vmul.f32 %v1770, 1.442695
      %v1887 = vpow.pop %v1886
      %v1888 = vmul.f32 %v1771, 1.442695
      %v1889 = vpow.pop %v1888
      %v1890 = vmul.f32 %v1772, 1.442695
      %v1891 = vpow.pop %v1890
      %v1892 = vmul.f32 %v1773, 1.442695
      %v1893 = vpow.pop %v1892
      %v1894 = vmul.f32 %v1774, 1.442695
      %v1895 = vpow.pop %v1894
      %v1896 = vmul.f32 %v1775, 1.442695
      %v1897 = vpow.pop %v1896
      %v1898 = vmul.f32 %v1776, 1.442695
      %v1899 = vpow.pop %v1898
      %v1900 = vmul.f32 %v1777, 1.442695
      %v1901 = vpow.pop %v1900
      %v1902 = vmul.f32 %v1778, 1.442695
      %v1903 = vpow.pop %v1902
      %v1904 = vmul.f32 %v1779, 1.442695
      %v1905 = vpow.pop %v1904
      %v1906 = vmul.f32 %v1780, 1.442695
      %v1907 = vpow.pop %v1906
      %v1908 = vmul.f32 %v1781, 1.442695
      %v1909 = vpow.pop %v1908
      %v1910 = vmul.f32 %v1782, 1.442695
      %v1911 = vpow.pop %v1910
      %v1912 = vmul.f32 %v1783, 1.442695
      %v1913 = vpow.pop %v1912
      %v1914 = vmul.f32 %v1784, 1.442695
      %v1915 = vpow.pop %v1914
      %v1916 = vmul.f32 %v1785, 1.442695
      %v1917 = vpow.pop %v1916
      %v1918 = vmul.f32 %v1786, 1.442695
      %v1919 = vpow.pop %v1918
      %v1920 = vmul.f32 %v1787, 1.442695
      %v1921 = vpow.pop %v1920
      %v1922 = vmul.f32 %v1788, 1.442695
      %v1923 = vpow.pop %v1922
      %v1924 = vmul.f32 %v1789, 1.442695
      %v1925 = vpow.pop %v1924
      %v1926 = vmul.f32 %v1790, 1.442695
      %v1927 = vpow.pop %v1926
      %v1928 = vmul.f32 %v1791, 1.442695
      %v1929 = vpow.pop %v1928
      %v1930 = vmul.f32 %v1792, 1.442695
      %v1931 = vpow.pop %v1930
      %v1932 = vmul.f32 %v1793, 1.442695
      %v1933 = vpow.pop %v1932
      %v1934 = vmul.f32 %v1794, 1.442695
      %v1935 = vpow.pop %v1934
      %v1936 = vmul.f32 %v1795, 1.442695
      %v1937 = vpow.pop %v1936
      %v1938 = vmul.f32 %v1796, 1.442695
      %v1939 = vpow.pop %v1938
      %v1940 = vmul.f32 %v1797, 1.442695
      %v1941 = vpow.pop %v1940
      %v1942 = vmul.f32 %v1798, 1.442695
      %v1943 = vpow.pop %v1942
      %v1944 = vmul.f32 %v1799, 1.442695
      %v1945 = vpow.pop %v1944
      %v1946 = vmul.f32 %v1800, 1.442695
      %v1947 = vpow.pop %v1946
      %v1948 = vmul.f32 %v1801, 1.442695
      %v1949 = vpow.pop %v1948
      %v1950 = vmul.f32 %v1802, 1.442695
      %v1951 = vpow.pop %v1950
      %v1952 = vmul.f32 %v1803, 1.442695
      %v1953 = vpow.pop %v1952
      %v1954 = vmul.f32 %v1804, 1.442695
      %v1955 = vpow.pop %v1954
      %v1956 = vmul.f32 %v1805, 1.442695
      %v1957 = vpow.pop %v1956
      %v1958 = vsel %vm1581, %v1807, 0.0
      %v1959 = vsel %vm1581, %v1815, 0.0
      %v1960 = vadd.f32 %v1958, %v1959
      %v1961 = vsel %vm1581, %v1823, 0.0
      %v1962 = vadd.f32 %v1960, %v1961
      %v1963 = vsel %vm1581, %v1831, 0.0
      %v1964 = vadd.f32 %v1962, %v1963
      %v1965 = vsel %vm1581, %v1839, 0.0
      %v1966 = vadd.f32 %v1964, %v1965
      %v1967 = vsel %vm1581, %v1847, 0.0
      %v1968 = vadd.f32 %v1966, %v1967
      %v1969 = vsel %vm1581, %v1855, 0.0
      %v1970 = vadd.f32 %v1968, %v1969
      %v1971 = vsel %vm1581, %v1863, 0.0
      %v1972 = vadd.f32 %v1970, %v1971
      %v1973 = vsel %vm1581, %v1871, 0.0
      %v1974 = vadd.f32 %v1972, %v1973
      %v1975 = vsel %vm1581, %v1879, 0.0
      %v1976 = vadd.f32 %v1974, %v1975
      %v1977 = vsel %vm1581, %v1887, 0.0
      %v1978 = vadd.f32 %v1976, %v1977
      %v1979 = vsel %vm1581, %v1895, 0.0
      %v1980 = vadd.f32 %v1978, %v1979
      %v1981 = vsel %vm1581, %v1903, 0.0
      %v1982 = vadd.f32 %v1980, %v1981
      %v1983 = vsel %vm1581, %v1911, 0.0
      %v1984 = vadd.f32 %v1982, %v1983
      %v1985 = vsel %vm1581, %v1919, 0.0
      %v1986 = vadd.f32 %v1984, %v1985
      %v1987 = vsel %vm1581, %v1927, 0.0
      %v1988 = vadd.f32 %v1986, %v1987
      %v1989 = vsel %vm1581, %v1935, 0.0
      %v1990 = vadd.f32 %v1988, %v1989
      %v1991 = vsel %vm1581, %v1943, 0.0
      %v1992 = vadd.f32 %v1990, %v1991
      %v1993 = vsel %vm1581, %v1951, 0.0
      %v1994 = vadd.f32 %v1992, %v1993
      %v1995 = vsel %vm1581, %v1809, 0.0
      %v1996 = vsel %vm1581, %v1817, 0.0
      %v1997 = vadd.f32 %v1995, %v1996
      %v1998 = vsel %vm1581, %v1825, 0.0
      %v1999 = vadd.f32 %v1997, %v1998
      %v2000 = vsel %vm1581, %v1833, 0.0
      %v2001 = vadd.f32 %v1999, %v2000
      %v2002 = vsel %vm1581, %v1841, 0.0
      %v2003 = vadd.f32 %v2001, %v2002
      %v2004 = vsel %vm1581, %v1849, 0.0
      %v2005 = vadd.f32 %v2003, %v2004
      %v2006 = vsel %vm1581, %v1857, 0.0
      %v2007 = vadd.f32 %v2005, %v2006
      %v2008 = vsel %vm1581, %v1865, 0.0
      %v2009 = vadd.f32 %v2007, %v2008
      %v2010 = vsel %vm1581, %v1873, 0.0
      %v2011 = vadd.f32 %v2009, %v2010
      %v2012 = vsel %vm1581, %v1881, 0.0
      %v2013 = vadd.f32 %v2011, %v2012
      %v2014 = vsel %vm1581, %v1889, 0.0
      %v2015 = vadd.f32 %v2013, %v2014
      %v2016 = vsel %vm1581, %v1897, 0.0
      %v2017 = vadd.f32 %v2015, %v2016
      %v2018 = vsel %vm1581, %v1905, 0.0
      %v2019 = vadd.f32 %v2017, %v2018
      %v2020 = vsel %vm1581, %v1913, 0.0
      %v2021 = vadd.f32 %v2019, %v2020
      %v2022 = vsel %vm1581, %v1921, 0.0
      %v2023 = vadd.f32 %v2021, %v2022
      %v2024 = vsel %vm1581, %v1929, 0.0
      %v2025 = vadd.f32 %v2023, %v2024
      %v2026 = vsel %vm1581, %v1937, 0.0
      %v2027 = vadd.f32 %v2025, %v2026
      %v2028 = vsel %vm1581, %v1945, 0.0
      %v2029 = vadd.f32 %v2027, %v2028
      %v2030 = vsel %vm1581, %v1953, 0.0
      %v2031 = vadd.f32 %v2029, %v2030
      %v2032 = vsel %vm1581, %v1811, 0.0
      %v2033 = vsel %vm1581, %v1819, 0.0
      %v2034 = vadd.f32 %v2032, %v2033
      %v2035 = vsel %vm1581, %v1827, 0.0
      %v2036 = vadd.f32 %v2034, %v2035
      %v2037 = vsel %vm1581, %v1835, 0.0
      %v2038 = vadd.f32 %v2036, %v2037
      %v2039 = vsel %vm1581, %v1843, 0.0
      %v2040 = vadd.f32 %v2038, %v2039
      %v2041 = vsel %vm1581, %v1851, 0.0
      %v2042 = vadd.f32 %v2040, %v2041
      %v2043 = vsel %vm1581, %v1859, 0.0
      %v2044 = vadd.f32 %v2042, %v2043
      %v2045 = vsel %vm1581, %v1867, 0.0
      %v2046 = vadd.f32 %v2044, %v2045
      %v2047 = vsel %vm1581, %v1875, 0.0
      %v2048 = vadd.f32 %v2046, %v2047
      %v2049 = vsel %vm1581, %v1883, 0.0
      %v2050 = vadd.f32 %v2048, %v2049
      %v2051 = vsel %vm1581, %v1891, 0.0
      %v2052 = vadd.f32 %v2050, %v2051
      %v2053 = vsel %vm1581, %v1899, 0.0
      %v2054 = vadd.f32 %v2052, %v2053
      %v2055 = vsel %vm1581, %v1907, 0.0
      %v2056 = vadd.f32 %v2054, %v2055
      %v2057 = vsel %vm1581, %v1915, 0.0
      %v2058 = vadd.f32 %v2056, %v2057
      %v2059 = vsel %vm1581, %v1923, 0.0
      %v2060 = vadd.f32 %v2058, %v2059
      %v2061 = vsel %vm1581, %v1931, 0.0
      %v2062 = vadd.f32 %v2060, %v2061
      %v2063 = vsel %vm1581, %v1939, 0.0
      %v2064 = vadd.f32 %v2062, %v2063
      %v2065 = vsel %vm1581, %v1947, 0.0
      %v2066 = vadd.f32 %v2064, %v2065
      %v2067 = vsel %vm1581, %v1955, 0.0
      %v2068 = vadd.f32 %v2066, %v2067
      %v2069 = vsel %vm1581, %v1813, 0.0
      %v2070 = vsel %vm1581, %v1821, 0.0
      %v2071 = vadd.f32 %v2069, %v2070
      %v2072 = vsel %vm1581, %v1829, 0.0
      %v2073 = vadd.f32 %v2071, %v2072
      %v2074 = vsel %vm1581, %v1837, 0.0
      %v2075 = vadd.f32 %v2073, %v2074
      %v2076 = vsel %vm1581, %v1845, 0.0
      %v2077 = vadd.f32 %v2075, %v2076
      %v2078 = vsel %vm1581, %v1853, 0.0
      %v2079 = vadd.f32 %v2077, %v2078
      %v2080 = vsel %vm1581, %v1861, 0.0
      %v2081 = vadd.f32 %v2079, %v2080
      %v2082 = vsel %vm1581, %v1869, 0.0
      %v2083 = vadd.f32 %v2081, %v2082
      %v2084 = vsel %vm1581, %v1877, 0.0
      %v2085 = vadd.f32 %v2083, %v2084
      %v2086 = vsel %vm1581, %v1885, 0.0
      %v2087 = vadd.f32 %v2085, %v2086
      %v2088 = vsel %vm1581, %v1893, 0.0
      %v2089 = vadd.f32 %v2087, %v2088
      %v2090 = vsel %vm1581, %v1901, 0.0
      %v2091 = vadd.f32 %v2089, %v2090
      %v2092 = vsel %vm1581, %v1909, 0.0
      %v2093 = vadd.f32 %v2091, %v2092
      %v2094 = vsel %vm1581, %v1917, 0.0
      %v2095 = vadd.f32 %v2093, %v2094
      %v2096 = vsel %vm1581, %v1925, 0.0
      %v2097 = vadd.f32 %v2095, %v2096
      %v2098 = vsel %vm1581, %v1933, 0.0
      %v2099 = vadd.f32 %v2097, %v2098
      %v2100 = vsel %vm1581, %v1941, 0.0
      %v2101 = vadd.f32 %v2099, %v2100
      %v2102 = vsel %vm1581, %v1949, 0.0
      %v2103 = vadd.f32 %v2101, %v2102
      %v2104 = vsel %vm1581, %v1957, 0.0
      %v2105 = vadd.f32 %v2103, %v2104
      %v2106 = vld [vmem:[%s308] sm:$0xff]
      %v2107 = vld [vmem:[%s308 + $0x8] sm:$0xff]
      %v2108 = vld [vmem:[%s308 + $0x10] sm:$0xff]
      %v2109 = vld [vmem:[%s308 + $0x18] sm:$0xff]
      %vm2110 = vcmp.eq.s32.totalorder %v2106, 0
      %vm2111 = vcmp.eq.s32.totalorder %v2107, 0
      %vm2112 = vcmp.eq.s32.totalorder %v2108, 0
      %vm2113 = vcmp.eq.s32.totalorder %v2109, 0
      %vm2114 = vcmp.eq.s32.totalorder %v2106, 1
      %vm2115 = vcmp.eq.s32.totalorder %v2107, 1
      %vm2116 = vcmp.eq.s32.totalorder %v2108, 1
      %vm2117 = vcmp.eq.s32.totalorder %v2109, 1
      %vm2118 = vcmp.eq.s32.totalorder %v2106, 2
      %vm2119 = vcmp.eq.s32.totalorder %v2107, 2
      %vm2120 = vcmp.eq.s32.totalorder %v2108, 2
      %vm2121 = vcmp.eq.s32.totalorder %v2109, 2
      %vm2122 = vcmp.eq.s32.totalorder %v2106, 3
      %vm2123 = vcmp.eq.s32.totalorder %v2107, 3
      %vm2124 = vcmp.eq.s32.totalorder %v2108, 3
      %vm2125 = vcmp.eq.s32.totalorder %v2109, 3
      %vm2126 = vcmp.eq.s32.totalorder %v2106, 4
      %vm2127 = vcmp.eq.s32.totalorder %v2107, 4
      %vm2128 = vcmp.eq.s32.totalorder %v2108, 4
      %vm2129 = vcmp.eq.s32.totalorder %v2109, 4
      %vm2130 = vcmp.eq.s32.totalorder %v2106, 5
      %vm2131 = vcmp.eq.s32.totalorder %v2107, 5
      %vm2132 = vcmp.eq.s32.totalorder %v2108, 5
      %vm2133 = vcmp.eq.s32.totalorder %v2109, 5
      %vm2134 = vcmp.eq.s32.totalorder %v2106, 6
      %vm2135 = vcmp.eq.s32.totalorder %v2107, 6
      %vm2136 = vcmp.eq.s32.totalorder %v2108, 6
      %vm2137 = vcmp.eq.s32.totalorder %v2109, 6
      %vm2138 = vcmp.eq.s32.totalorder %v2106, 7
      %vm2139 = vcmp.eq.s32.totalorder %v2107, 7
      %vm2140 = vcmp.eq.s32.totalorder %v2108, 7
      %vm2141 = vcmp.eq.s32.totalorder %v2109, 7
      %vm2142 = vcmp.eq.s32.totalorder %v2106, 8
      %vm2143 = vcmp.eq.s32.totalorder %v2107, 8
      %vm2144 = vcmp.eq.s32.totalorder %v2108, 8
      %vm2145 = vcmp.eq.s32.totalorder %v2109, 8
      %vm2146 = vcmp.eq.s32.totalorder %v2106, 9
      %vm2147 = vcmp.eq.s32.totalorder %v2107, 9
      %vm2148 = vcmp.eq.s32.totalorder %v2108, 9
      %vm2149 = vcmp.eq.s32.totalorder %v2109, 9
      %vm2150 = vcmp.eq.s32.totalorder %v2106, 10
      %vm2151 = vcmp.eq.s32.totalorder %v2107, 10
      %vm2152 = vcmp.eq.s32.totalorder %v2108, 10
      %vm2153 = vcmp.eq.s32.totalorder %v2109, 10
      %vm2154 = vcmp.eq.s32.totalorder %v2106, 11
      %vm2155 = vcmp.eq.s32.totalorder %v2107, 11
      %vm2156 = vcmp.eq.s32.totalorder %v2108, 11
      %vm2157 = vcmp.eq.s32.totalorder %v2109, 11
      %vm2158 = vcmp.eq.s32.totalorder %v2106, 12
      %vm2159 = vcmp.eq.s32.totalorder %v2107, 12
      %vm2160 = vcmp.eq.s32.totalorder %v2108, 12
      %vm2161 = vcmp.eq.s32.totalorder %v2109, 12
      %vm2162 = vcmp.eq.s32.totalorder %v2106, 13
      %vm2163 = vcmp.eq.s32.totalorder %v2107, 13
      %vm2164 = vcmp.eq.s32.totalorder %v2108, 13
      %vm2165 = vcmp.eq.s32.totalorder %v2109, 13
      %vm2166 = vcmp.eq.s32.totalorder %v2106, 14
      %vm2167 = vcmp.eq.s32.totalorder %v2107, 14
      %vm2168 = vcmp.eq.s32.totalorder %v2108, 14
      %vm2169 = vcmp.eq.s32.totalorder %v2109, 14
      %vm2170 = vcmp.eq.s32.totalorder %v2106, 15
      %vm2171 = vcmp.eq.s32.totalorder %v2107, 15
      %vm2172 = vcmp.eq.s32.totalorder %v2108, 15
      %vm2173 = vcmp.eq.s32.totalorder %v2109, 15
      %vm2174 = vcmp.eq.s32.totalorder %v2106, 16
      %vm2175 = vcmp.eq.s32.totalorder %v2107, 16
      %vm2176 = vcmp.eq.s32.totalorder %v2108, 16
      %vm2177 = vcmp.eq.s32.totalorder %v2109, 16
      %vm2178 = vcmp.eq.s32.totalorder %v2106, 17
      %vm2179 = vcmp.eq.s32.totalorder %v2107, 17
      %vm2180 = vcmp.eq.s32.totalorder %v2108, 17
      %vm2181 = vcmp.eq.s32.totalorder %v2109, 17
      %vm2182 = vcmp.eq.s32.totalorder %v2106, 18
      %vm2183 = vcmp.eq.s32.totalorder %v2107, 18
      %vm2184 = vcmp.eq.s32.totalorder %v2108, 18
      %vm2185 = vcmp.eq.s32.totalorder %v2109, 18
      %v2186 = vsel %vm2110, %v1354, 0.0
      %v2187 = vsel %vm2111, %v1357, 0.0
      %v2188 = vsel %vm2112, %v1360, 0.0
      %v2189 = vsel %vm2113, %v1363, 0.0
      %v2190 = vsel %vm2114, %v1366, 0.0
      %v2191 = vsel %vm2115, %v1369, 0.0
      %v2192 = vsel %vm2116, %v1372, 0.0
      %v2193 = vsel %vm2117, %v1375, 0.0
      %v2194 = vsel %vm2118, %v1378, 0.0
      %v2195 = vsel %vm2119, %v1381, 0.0
      %v2196 = vsel %vm2120, %v1384, 0.0
      %v2197 = vsel %vm2121, %v1387, 0.0
      %v2198 = vsel %vm2122, %v1390, 0.0
      %v2199 = vsel %vm2123, %v1393, 0.0
      %v2200 = vsel %vm2124, %v1396, 0.0
      %v2201 = vsel %vm2125, %v1399, 0.0
      %v2202 = vsel %vm2126, %v1402, 0.0
      %v2203 = vsel %vm2127, %v1405, 0.0
      %v2204 = vsel %vm2128, %v1408, 0.0
      %v2205 = vsel %vm2129, %v1411, 0.0
      %v2206 = vsel %vm2130, %v1414, 0.0
      %v2207 = vsel %vm2131, %v1417, 0.0
      %v2208 = vsel %vm2132, %v1420, 0.0
      %v2209 = vsel %vm2133, %v1423, 0.0
      %v2210 = vsel %vm2134, %v1426, 0.0
      %v2211 = vsel %vm2135, %v1429, 0.0
      %v2212 = vsel %vm2136, %v1432, 0.0
      %v2213 = vsel %vm2137, %v1435, 0.0
      %v2214 = vsel %vm2138, %v1438, 0.0
      %v2215 = vsel %vm2139, %v1441, 0.0
      %v2216 = vsel %vm2140, %v1444, 0.0
      %v2217 = vsel %vm2141, %v1447, 0.0
      %v2218 = vsel %vm2142, %v1450, 0.0
      %v2219 = vsel %vm2143, %v1453, 0.0
      %v2220 = vsel %vm2144, %v1456, 0.0
      %v2221 = vsel %vm2145, %v1459, 0.0
      %v2222 = vsel %vm2146, %v1462, 0.0
      %v2223 = vsel %vm2147, %v1465, 0.0
      %v2224 = vsel %vm2148, %v1468, 0.0
      %v2225 = vsel %vm2149, %v1471, 0.0
      %v2226 = vsel %vm2150, %v1474, 0.0
      %v2227 = vsel %vm2151, %v1477, 0.0
      %v2228 = vsel %vm2152, %v1480, 0.0
      %v2229 = vsel %vm2153, %v1483, 0.0
      %v2230 = vsel %vm2154, %v1486, 0.0
      %v2231 = vsel %vm2155, %v1489, 0.0
      %v2232 = vsel %vm2156, %v1492, 0.0
      %v2233 = vsel %vm2157, %v1495, 0.0
      %v2234 = vsel %vm2158, %v1498, 0.0
      %v2235 = vsel %vm2159, %v1501, 0.0
      %v2236 = vsel %vm2160, %v1504, 0.0
      %v2237 = vsel %vm2161, %v1507, 0.0
      %v2238 = vsel %vm2162, %v1510, 0.0
      %v2239 = vsel %vm2163, %v1513, 0.0
      %v2240 = vsel %vm2164, %v1516, 0.0
      %v2241 = vsel %vm2165, %v1519, 0.0
      %v2242 = vsel %vm2166, %v1522, 0.0
      %v2243 = vsel %vm2167, %v1525, 0.0
      %v2244 = vsel %vm2168, %v1528, 0.0
      %v2245 = vsel %vm2169, %v1531, 0.0
      %v2246 = vsel %vm2170, %v1534, 0.0
      %v2247 = vsel %vm2171, %v1537, 0.0
      %v2248 = vsel %vm2172, %v1540, 0.0
      %v2249 = vsel %vm2173, %v1543, 0.0
      %v2250 = vsel %vm2174, %v1546, 0.0
      %v2251 = vsel %vm2175, %v1549, 0.0
      %v2252 = vsel %vm2176, %v1552, 0.0
      %v2253 = vsel %vm2177, %v1555, 0.0
      %v2254 = vsel %vm2178, %v1558, 0.0
      %v2255 = vsel %vm2179, %v1561, 0.0
      %v2256 = vsel %vm2180, %v1564, 0.0
      %v2257 = vsel %vm2181, %v1567, 0.0
      %v2258 = vsel %vm2182, %v1570, 0.0
      %v2259 = vsel %vm2183, %v1573, 0.0
      %v2260 = vsel %vm2184, %v1576, 0.0
      %v2261 = vsel %vm2185, %v1579, 0.0
      %v2262 = vsel %vm1581, %v2186, 0.0
      %v2263 = vsel %vm1581, %v2190, 0.0
      %v2264 = vadd.f32 %v2262, %v2263
      %v2265 = vsel %vm1581, %v2194, 0.0
      %v2266 = vadd.f32 %v2264, %v2265
      %v2267 = vsel %vm1581, %v2198, 0.0
      %v2268 = vadd.f32 %v2266, %v2267
      %v2269 = vsel %vm1581, %v2202, 0.0
      %v2270 = vadd.f32 %v2268, %v2269
      %v2271 = vsel %vm1581, %v2206, 0.0
      %v2272 = vadd.f32 %v2270, %v2271
      %v2273 = vsel %vm1581, %v2210, 0.0
      %v2274 = vadd.f32 %v2272, %v2273
      %v2275 = vsel %vm1581, %v2214, 0.0
      %v2276 = vadd.f32 %v2274, %v2275
      %v2277 = vsel %vm1581, %v2218, 0.0
      %v2278 = vadd.f32 %v2276, %v2277
      %v2279 = vsel %vm1581, %v2222, 0.0
      %v2280 = vadd.f32 %v2278, %v2279
      %v2281 = vsel %vm1581, %v2226, 0.0
      %v2282 = vadd.f32 %v2280, %v2281
      %v2283 = vsel %vm1581, %v2230, 0.0
      %v2284 = vadd.f32 %v2282, %v2283
      %v2285 = vsel %vm1581, %v2234, 0.0
      %v2286 = vadd.f32 %v2284, %v2285
      %v2287 = vsel %vm1581, %v2238, 0.0
      %v2288 = vadd.f32 %v2286, %v2287
      %v2289 = vsel %vm1581, %v2242, 0.0
      %v2290 = vadd.f32 %v2288, %v2289
      %v2291 = vsel %vm1581, %v2246, 0.0
      %v2292 = vadd.f32 %v2290, %v2291
      %v2293 = vsel %vm1581, %v2250, 0.0
      %v2294 = vadd.f32 %v2292, %v2293
      %v2295 = vsel %vm1581, %v2254, 0.0
      %v2296 = vadd.f32 %v2294, %v2295
      %v2297 = vsel %vm1581, %v2258, 0.0
      %v2298 = vadd.f32 %v2296, %v2297
      %v2299 = vsel %vm1581, %v2187, 0.0
      %v2300 = vsel %vm1581, %v2191, 0.0
      %v2301 = vadd.f32 %v2299, %v2300
      %v2302 = vsel %vm1581, %v2195, 0.0
      %v2303 = vadd.f32 %v2301, %v2302
      %v2304 = vsel %vm1581, %v2199, 0.0
      %v2305 = vadd.f32 %v2303, %v2304
      %v2306 = vsel %vm1581, %v2203, 0.0
      %v2307 = vadd.f32 %v2305, %v2306
      %v2308 = vsel %vm1581, %v2207, 0.0
      %v2309 = vadd.f32 %v2307, %v2308
      %v2310 = vsel %vm1581, %v2211, 0.0
      %v2311 = vadd.f32 %v2309, %v2310
      %v2312 = vsel %vm1581, %v2215, 0.0
      %v2313 = vadd.f32 %v2311, %v2312
      %v2314 = vsel %vm1581, %v2219, 0.0
      %v2315 = vadd.f32 %v2313, %v2314
      %v2316 = vsel %vm1581, %v2223, 0.0
      %v2317 = vadd.f32 %v2315, %v2316
      %v2318 = vsel %vm1581, %v2227, 0.0
      %v2319 = vadd.f32 %v2317, %v2318
      %v2320 = vsel %vm1581, %v2231, 0.0
      %v2321 = vadd.f32 %v2319, %v2320
      %v2322 = vsel %vm1581, %v2235, 0.0
      %v2323 = vadd.f32 %v2321, %v2322
      %v2324 = vsel %vm1581, %v2239, 0.0
      %v2325 = vadd.f32 %v2323, %v2324
      %v2326 = vsel %vm1581, %v2243, 0.0
      %v2327 = vadd.f32 %v2325, %v2326
      %v2328 = vsel %vm1581, %v2247, 0.0
      %v2329 = vadd.f32 %v2327, %v2328
      %v2330 = vsel %vm1581, %v2251, 0.0
      %v2331 = vadd.f32 %v2329, %v2330
      %v2332 = vsel %vm1581, %v2255, 0.0
      %v2333 = vadd.f32 %v2331, %v2332
      %v2334 = vsel %vm1581, %v2259, 0.0
      %v2335 = vadd.f32 %v2333, %v2334
      %v2336 = vsel %vm1581, %v2188, 0.0
      %v2337 = vsel %vm1581, %v2192, 0.0
      %v2338 = vadd.f32 %v2336, %v2337
      %v2339 = vsel %vm1581, %v2196, 0.0
      %v2340 = vadd.f32 %v2338, %v2339
      %v2341 = vsel %vm1581, %v2200, 0.0
      %v2342 = vadd.f32 %v2340, %v2341
      %v2343 = vsel %vm1581, %v2204, 0.0
      %v2344 = vadd.f32 %v2342, %v2343
      %v2345 = vsel %vm1581, %v2208, 0.0
      %v2346 = vadd.f32 %v2344, %v2345
      %v2347 = vsel %vm1581, %v2212, 0.0
      %v2348 = vadd.f32 %v2346, %v2347
      %v2349 = vsel %vm1581, %v2216, 0.0
      %v2350 = vadd.f32 %v2348, %v2349
      %v2351 = vsel %vm1581, %v2220, 0.0
      %v2352 = vadd.f32 %v2350, %v2351
      %v2353 = vsel %vm1581, %v2224, 0.0
      %v2354 = vadd.f32 %v2352, %v2353
      %v2355 = vsel %vm1581, %v2228, 0.0
      %v2356 = vadd.f32 %v2354, %v2355
      %v2357 = vsel %vm1581, %v2232, 0.0
      %v2358 = vadd.f32 %v2356, %v2357
      %v2359 = vsel %vm1581, %v2236, 0.0
      %v2360 = vadd.f32 %v2358, %v2359
      %v2361 = vsel %vm1581, %v2240, 0.0
      %v2362 = vadd.f32 %v2360, %v2361
      %v2363 = vsel %vm1581, %v2244, 0.0
      %v2364 = vadd.f32 %v2362, %v2363
      %v2365 = vsel %vm1581, %v2248, 0.0
      %v2366 = vadd.f32 %v2364, %v2365
      %v2367 = vsel %vm1581, %v2252, 0.0
      %v2368 = vadd.f32 %v2366, %v2367
      %v2369 = vsel %vm1581, %v2256, 0.0
      %v2370 = vadd.f32 %v2368, %v2369
      %v2371 = vsel %vm1581, %v2260, 0.0
      %v2372 = vadd.f32 %v2370, %v2371
      %v2373 = vsel %vm1581, %v2189, 0.0
      %v2374 = vsel %vm1581, %v2193, 0.0
      %v2375 = vadd.f32 %v2373, %v2374
      %v2376 = vsel %vm1581, %v2197, 0.0
      %v2377 = vadd.f32 %v2375, %v2376
      %v2378 = vsel %vm1581, %v2201, 0.0
      %v2379 = vadd.f32 %v2377, %v2378
      %v2380 = vsel %vm1581, %v2205, 0.0
      %v2381 = vadd.f32 %v2379, %v2380
      %v2382 = vsel %vm1581, %v2209, 0.0
      %v2383 = vadd.f32 %v2381, %v2382
      %v2384 = vsel %vm1581, %v2213, 0.0
      %v2385 = vadd.f32 %v2383, %v2384
      %v2386 = vsel %vm1581, %v2217, 0.0
      %v2387 = vadd.f32 %v2385, %v2386
      %v2388 = vsel %vm1581, %v2221, 0.0
      %v2389 = vadd.f32 %v2387, %v2388
      %v2390 = vsel %vm1581, %v2225, 0.0
      %v2391 = vadd.f32 %v2389, %v2390
      %v2392 = vsel %vm1581, %v2229, 0.0
      %v2393 = vadd.f32 %v2391, %v2392
      %v2394 = vsel %vm1581, %v2233, 0.0
      %v2395 = vadd.f32 %v2393, %v2394
      %v2396 = vsel %vm1581, %v2237, 0.0
      %v2397 = vadd.f32 %v2395, %v2396
      %v2398 = vsel %vm1581, %v2241, 0.0
      %v2399 = vadd.f32 %v2397, %v2398
      %v2400 = vsel %vm1581, %v2245, 0.0
      %v2401 = vadd.f32 %v2399, %v2400
      %v2402 = vsel %vm1581, %v2249, 0.0
      %v2403 = vadd.f32 %v2401, %v2402
      %v2404 = vsel %vm1581, %v2253, 0.0
      %v2405 = vadd.f32 %v2403, %v2404
      %v2406 = vsel %vm1581, %v2257, 0.0
      %v2407 = vadd.f32 %v2405, %v2406
      %v2408 = vsel %vm1581, %v2261, 0.0
      %v2409 = vadd.f32 %v2407, %v2408
      %v2410 = vlog2.pop %v1994
      %v2411 = vmul.f32 %v2410, 0.6931472
      %v2412 = vlog2.pop %v2031
      %v2413 = vmul.f32 %v2412, 0.6931472
      %v2414 = vlog2.pop %v2068
      %v2415 = vmul.f32 %v2414, 0.6931472
      %v2416 = vlog2.pop %v2105
      %v2417 = vmul.f32 %v2416, 0.6931472
      %v2418 = vadd.f32 %v1618, %v2411
      %v2419 = vadd.f32 %v1655, %v2413
      %v2420 = vadd.f32 %v1692, %v2415
      %v2421 = vadd.f32 %v1729, %v2417
      %v2422 = vsub.f32 %v2418, %v2298
      %v2423 = vsub.f32 %v2419, %v2335
      %v2424 = vsub.f32 %v2420, %v2372
      %v2425 = vsub.f32 %v2421, %v2409
      %2426 = vst.msk [vmem:[%s318] sm:$0xff] %vm1581, %v2422
      %2427 = vst.msk [vmem:[%s318 + $0x8] sm:$0xff] %vm1581, %v2423
      %2428 = vst.msk [vmem:[%s318 + $0x10] sm:$0xff] %vm1581, %v2424
      %2429 = vst.msk [vmem:[%s318 + $0x18] sm:$0xff] %vm1581, %v2425
      %v2430 = vsub.f32 0.0, %v2422
      %v2431 = vsub.f32 0.0, %v2423
      %v2432 = vsub.f32 0.0, %v2424
      %v2433 = vsub.f32 0.0, %v2425
      %v2434 = vmul.f32 %v2430, 1.442695
      %v2435 = vpow.pop %v2434
      %v2436 = vmul.f32 %v2431, 1.442695
      %v2437 = vpow.pop %v2436
      %v2438 = vmul.f32 %v2432, 1.442695
      %v2439 = vpow.pop %v2438
      %v2440 = vmul.f32 %v2433, 1.442695
      %v2441 = vpow.pop %v2440
      %2442 = vst.msk [vmem:[%s328] sm:$0xff] %vm1581, %v2435
      %2443 = vst.msk [vmem:[%s328 + $0x8] sm:$0xff] %vm1581, %v2437
      %2444 = vst.msk [vmem:[%s328 + $0x10] sm:$0xff] %vm1581, %v2439
      %2445 = vst.msk [vmem:[%s328 + $0x18] sm:$0xff] %vm1581, %v2441
      %s2446 = smul.u32 4, %s22
      %p2447 = scmp.lt.s32.totalorder %s21, 3
      %s2448 = scalar_select %p2447, %s21, 3
      %p2449 = scmp.lt.s32.totalorder %s2446, 3
      %s2450 = scalar_select %p2449, %s2446, 3
      %s2451 = smul.addr %s2448, 4
      %s2452 = sadd.s32 %s2450, %s2451
      %s2453 = smul.addr %s2452, 8
      %s2454 = scalar_lea.vmem %s4, %s2453
      %s2455 = smul.u32 4, %s22
      %p2456 = scmp.lt.s32.totalorder %s21, 3
      %s2457 = scalar_select %p2456, %s21, 3
      %p2458 = scmp.lt.s32.totalorder %s2455, 3
      %s2459 = scalar_select %p2458, %s2455, 3
      %s2460 = smul.addr %s2457, 4
      %s2461 = sadd.s32 %s2459, %s2460
      %s2462 = smul.addr %s2461, 8
      %s2463 = scalar_lea.vmem %s5, %s2462
      // Predicated region
      $region37: #{criterion_ohem_dsn.1} parent=35 // pred_check
        %p2464 = pneg %p150
      $region38: #{criterion_ohem_dsn.1} parent=35 // pred_check_branch
        %2466 = sbr.rel (%p2464) target = $region40
      $region39: #{criterion_ohem_dsn.1} parent=35 // pred_region
        %s2467 = smul.u32 4, %s22
      $region40: #{criterion_ohem_dsn.1} parent=35 // pred_fallthru
        _
      // Predicated region
      $region41: #{criterion_ohem_dsn.1} parent=35 // pred_check
        %p2468 = pneg %p178
      $region42: #{criterion_ohem_dsn.1} parent=35 // pred_check_branch
        %2470 = sbr.rel (%p2468) target = $region44
      $region43: #{criterion_ohem_dsn.1} parent=35 // pred_region
        %s2471 = smul.u32 4, %s22
      $region44: #{criterion_ohem_dsn.1} parent=35 // pred_fallthru
        _
    $region36: #{criterion_ohem_dsn.1} parent=5 // pred_fallthru
      _
    %p2472 = scmp.le.s32.totalorder 2, %s12
    // Predicated region
    $region45: #{criterion_ohem_dsn.1} parent=5 // pred_check
      %p2473 = pneg %p2472
    $region46: #{criterion_ohem_dsn.1} parent=5 // pred_check_branch
      %2475 = sbr.rel (%p2473) target = $region48
    $region47: #{criterion_ohem_dsn.1} parent=5 // pred_region
      %s2476 = ssub.s32 %s12, 2
      // Predicated region
      $region49: #{criterion_ohem_dsn.1} parent=47 // pred_check
        %p2477 = pneg %p156
      $region50: #{criterion_ohem_dsn.1} parent=47 // pred_check_branch
        %2479 = sbr.rel (%p2477) target = $region52
      $region51: #{criterion_ohem_dsn.1} parent=47 // pred_region
        %s2480 = smul.u32 4, %s24
        %p2481 = scmp.lt.s32.totalorder %s23, 3
        %s2482 = scalar_select %p2481, %s23, 3
        %p2483 = scmp.lt.s32.totalorder %s2480, 3
        %s2484 = scalar_select %p2483, %s2480, 3
        %s2485 = smul.addr %s2482, 4
        %s2486 = sadd.s32 %s2484, %s2485
        %s2487 = smul.addr %s2486, 8
        %s2488 = scalar_lea.vmem %s4, %s2487
      $region52: #{criterion_ohem_dsn.1} parent=47 // pred_fallthru
        _
      // Predicated region
      $region53: #{criterion_ohem_dsn.1} parent=47 // pred_check
        %p2489 = pneg %p184
      $region54: #{criterion_ohem_dsn.1} parent=47 // pred_check_branch
        %2491 = sbr.rel (%p2489) target = $region56
      $region55: #{criterion_ohem_dsn.1} parent=47 // pred_region
        %s2492 = smul.u32 4, %s24
        %p2493 = scmp.lt.s32.totalorder %s23, 3
        %s2494 = scalar_select %p2493, %s23, 3
        %p2495 = scmp.lt.s32.totalorder %s2492, 3
        %s2496 = scalar_select %p2495, %s2492, 3
        %s2497 = smul.addr %s2494, 4
        %s2498 = sadd.s32 %s2496, %s2497
        %s2499 = smul.addr %s2498, 8
        %s2500 = scalar_lea.vmem %s5, %s2499
      $region56: #{criterion_ohem_dsn.1} parent=47 // pred_fallthru
        _
    $region48: #{criterion_ohem_dsn.1} parent=5 // pred_fallthru
      _
  $region6: #{criterion_ohem_dsn.1} parent=0 // loop_footer
    %s16 = sadd.s32 1, %s12
  $region7: #{criterion_ohem_dsn.1} parent=0 // loop_footer_branch
    %11 = sbr.rel target = $region3
  $region8: #{criterion_ohem_dsn.1} parent=0 // loop_exit
    _

</llo_original>
